<compile_context>
chip_gen: v7x
topology: tpu7x:2x2x1
jax: 0.10.0
libtpu: 0.0.40
codegen_flags: <defaults>
</compile_context>

<pallas_src>
import jax
import jax.numpy as jnp
import numpy as np
from jax.experimental import pallas as pl
from jax.experimental.pallas import tpu as pltpu

EMB = 40
HEADS = 8
HEAD_DIM = EMB // HEADS          # 5
P_DIM = EMB // 4                 # FAN cos/sin branch width -> 10
G_DIM = EMB - 2 * P_DIM          # FAN linear branch width  -> 20
INV_SCALE = 1.0 / (float(EMB) ** 0.5)


def faa_residual_kernel(x_ref, dg_ref, wfan_ref, bfan_ref, fanmask_ref, hmask_ref,
                        dgw_ref, dgb_ref, projw_ref, projb_ref, out_ref):
    bt, heads, n, _ = dg_ref.shape            # dg block is (bt, HEADS, n, n); static at trace time

    x = x_ref[...]                            # (bt*n, E), native dtype
    x_f32 = x.astype(jnp.float32)

    # ---- fused FAN projections: q|k|v in one bf16 (M,40)@(40,120) MXU push -------------
    z = jnp.dot(x.astype(jnp.bfloat16), wfan_ref[...],
                preferred_element_type=jnp.float32) + bfan_ref[...]       # (bt*n, 120) f32
    fm = fanmask_ref[...]                                                  # (3, 120) {0,1} f32
    qkv = fm[0:1, :] * jnp.cos(z) + fm[1:2, :] * jnp.sin(z) + fm[2:3, :] * z

    q3 = qkv[:, :EMB].reshape(bt, n, EMB)
    k3 = qkv[:, EMB:2 * EMB].reshape(bt, n, EMB)
    v3 = qkv[:, 2 * EMB:].reshape(bt, n, EMB)

    # ---- dynamic-graph gates: VPU multiply + lane reduction (no MXU) --------------------
    # dgw rows are zero-padded to width E, so full-width reductions equal the reference's
    # q[..., :20] @ dgw1 / q[..., 20:] @ dgw2 products.
    dgw = dgw_ref[...]                                                     # (2, E) f32
    w_front = jax.nn.sigmoid(
        jnp.sum(q3 * dgw[0:1, :], axis=-1, keepdims=True) + dgb_ref[0])    # (bt, n, 1)
    w_back = jax.nn.sigmoid(
        jnp.sum(q3 * dgw[1:2, :], axis=-1, keepdims=True) + dgb_ref[1])    # (bt, n, 1)

    # ---- attention: heads folded into the query/M axis, batched over bt only ------------
    hmask = hmask_ref[...]                                                 # (HEADS, E) {0,1} f32
    k_bf = k3.astype(jnp.bfloat16)
    v_bf = v3.astype(jnp.bfloat16)

    # qm[b, h*n + q, :] = head-h lanes of q3[b, q, :]
    qm = (q3[:, None, :, :] * hmask[None, :, None, :]).reshape(bt, heads * n, EMB)

    # energy[b, h*n+q, k] = sum over head-h lanes of q*k (q masked -> K=40 contraction exact)
    energy = jnp.einsum('bqd,bkd->bqk', qm.astype(jnp.bfloat16), k_bf,
                        preferred_element_type=jnp.float32)                # (bt, H*n, n)
    energy = energy.reshape(bt, heads, n, n)

    # gate select: heads 0..3 -> w_front, heads 4..7 -> w_back (pure VPU select, no concat)
    hsel = jax.lax.broadcasted_iota(jnp.int32, (1, heads, 1, 1), 1) < (heads // 2)
    w_sel = jnp.where(hsel, w_front[:, None, :, :], w_back[:, None, :, :])  # (bt, H, n, 1)
    energy = (energy + w_sel * dg_ref[...].astype(jnp.float32)) * jnp.float32(INV_SCALE)

    # stabilized softmax over keys (approx reciprocal on EUP; fine at test tolerance)
    energy = energy - jnp.max(energy, axis=-1, keepdims=True)
    pexp = jnp.exp(energy)
    att = pexp * pl.reciprocal(jnp.sum(pexp, axis=-1, keepdims=True), approx=True)

    # out(head h) lives only in head-h columns of (att_h @ v); masking AFTER the contraction
    # is identical to masking v (mask acts on the output/d axis) and avoids v broadcasts.
    o_full = jnp.einsum('bqk,bkd->bqd',
                        att.reshape(bt, heads * n, n).astype(jnp.bfloat16), v_bf,
                        preferred_element_type=jnp.float32)                # (bt, H*n, E)
    o = jnp.sum(o_full.reshape(bt, heads, n, EMB) * hmask[None, :, None, :], axis=1)
    o = o.reshape(bt * n, EMB)

    # ---- output projection (kept f32 for accuracy) + residual ---------------------------
    o = jnp.dot(o, projw_ref[...], preferred_element_type=jnp.float32) + projb_ref[...]
    out_ref[...] = (x_f32 + o).astype(out_ref.dtype)


def _full_spec(shape):
    nd = len(shape)
    return pl.BlockSpec(shape, lambda b, _nd=nd: (0,) * _nd)


def residual_faa(x, dg1, dg2, params, *, batch_tile=128,
                 vmem_limit_bytes=48 * 1024 * 1024):
    """x: (B, n, EMB); dg1/dg2: (B, 4, n, n). Returns x + FAA(x, dg1, dg2).

    batch_tile: batch elements per grid step (M rows into the matmuls = batch_tile*n).
      It is capped at ceil(B/2) so the parallel grid axis has >=2 blocks (v7x 2-TC sharding).
    vmem_limit_bytes: 48 MiB is safe on every generation; on v5e/v6e (128 MiB VMEM) it can be
      raised (~100 MiB) together with batch_tile, on v7x (64 MiB) keep it at/below ~48-56 MiB
      and re-derive the dg block footprint (HEADS*bt*n*128*4 B lane-padded, double-buffered).
    """
    B, n, E = x.shape
    assert E == EMB
    f32 = jnp.float32
    p = {k: jnp.asarray(v, f32) for k, v in params.items()}

    # --- pack FAN weights: fused per-projection layout [Wp | Wp | Wg] -> (40, 120), bf16 --
    def pack_fan(pw, pb, gw, gb):
        return (jnp.concatenate([pw, pw, gw], axis=1),
                jnp.concatenate([pb, pb, gb], axis=0))

    wq, bq = pack_fan(p["qp_w"], p["qp_b"], p["qg_w"], p["qg_b"])
    wk, bk = pack_fan(p["kp_w"], p["kp_b"], p["kg_w"], p["kg_b"])
    wv, bv = pack_fan(p["vp_w"], p["vp_b"], p["vg_w"], p["vg_b"])
    w_fan = jnp.concatenate([wq, wk, wv], axis=1).astype(jnp.bfloat16)      # (40, 120) bf16
    b_fan = jnp.concatenate([bq, bk, bv], axis=0).reshape(1, 3 * EMB)       # (1, 120) f32

    # --- grid-invariant constant masks (built once, resident VMEM operands) ---------------
    col = np.arange(3 * EMB) % EMB
    fan_mask = jnp.asarray(np.stack([col < P_DIM,
                                     (col >= P_DIM) & (col < 2 * P_DIM),
                                     col >= 2 * P_DIM]), dtype=f32)          # (3, 120)
    lane = np.arange(EMB)
    h_mask = jnp.asarray(np.stack([(lane >= h * HEAD_DIM) & (lane < (h + 1) * HEAD_DIM)
                                   for h in range(HEADS)]), dtype=f32)       # (HEADS, 40)

    # --- gate weights zero-padded to width E; gate biases go to SMEM ----------------------
    dgw = jnp.zeros((2, EMB), f32)
    dgw = dgw.at[0, :G_DIM].set(p["dgw1"][:, 0])
    dgw = dgw.at[1, G_DIM:].set(p["dgw2"][:, 0])
    dgb = jnp.stack([p["dgb1"][0], p["dgb2"][0]])                            # (2,)

    proj_w = p["proj_w"]                                                     # (40, 40) f32
    proj_b = p["proj_b"].reshape(1, EMB)

    # --- batch tiling: big tiles, >=2 grid blocks, prefer a divisor of B (skip the pad) ---
    cap = 1 if B <= 1 else max(1, min(batch_tile, (B + 1) // 2))
    div = max(d for d in range(1, cap + 1) if B % d == 0)
    bt = div if 2 * div >= cap else cap          # fall back to padded last block if the
    nblk = pl.cdiv(B, bt)                        # best divisor leaves tiles too small
    b_pad = nblk * bt

    # native dtypes in, cast inside the kernel; dg stays batch-major (no HBM transpose)
    x2 = x.reshape(B * n, E)
    dg = jnp.concatenate([dg1, dg2], axis=1)                                 # (B, 8, n, n)
    if b_pad != B:
        x2 = jnp.pad(x2, ((0, (b_pad - B) * n), (0, 0)))
        dg = jnp.pad(dg, ((0, b_pad - B), (0, 0), (0, 0), (0, 0)))

    out = pl.pallas_call(
        faa_residual_kernel,
        grid=(nblk,),
        in_specs=[
            pl.BlockSpec((bt * n, E), lambda b: (b, 0)),                     # x (flattened rows)
            pl.BlockSpec((bt, HEADS, n, n), lambda b: (b, 0, 0, 0)),         # dg, batch-major
            _full_spec((EMB, 3 * EMB)),                                      # fused FAN weight (bf16)
            _full_spec((1, 3 * EMB)),                                        # fused FAN bias
            _full_spec((3, 3 * EMB)),                                        # cos/sin/linear masks
            _full_spec((HEADS, EMB)),                                        # per-head lane masks
            _full_spec((2, EMB)),                                            # gate weights
            pl.BlockSpec(memory_space=pltpu.MemorySpace.SMEM),               # gate biases (2,)
            _full_spec((EMB, EMB)),                                          # projection weight
            _full_spec((1, EMB)),                                            # projection bias
        ],
        out_specs=pl.BlockSpec((bt * n, E), lambda b: (b, 0)),
        out_shape=jax.ShapeDtypeStruct((b_pad * n, E), x.dtype),
        compiler_params=pltpu.CompilerParams(
            dimension_semantics=("parallel",),       # batch axis independent -> 2 TCs on v7x
            vmem_limit_bytes=vmem_limit_bytes),
    )(x2, dg, w_fan, b_fan, fan_mask, h_mask, dgw, dgb, proj_w, proj_b)

    return out[: B * n].reshape(B, n, E)


# -----------------------------------------------------------------------------
# Pure-JAX reference mirroring the PyTorch ResidualAdd(FAA) forward (f32).
# -----------------------------------------------------------------------------
def reference(x, dg1, dg2, p):
    B, n, E = x.shape

    def fan(z, pw, pb, gw, gb):
        pp = z @ pw + pb
        g = z @ gw + gb
        return jnp.concatenate([jnp.cos(pp), jnp.sin(pp), g], -1)

    q = fan(x, p["qp_w"], p["qp_b"], p["qg_w"], p["qg_b"])
    k = fan(x, p["kp_w"], p["kp_b"], p["kg_w"], p["kg_b"])
    v = fan(x, p["vp_w"], p["vp_b"], p["vg_w"], p["vg_b"])

    def split_heads(t):
        return t.reshape(B, n, HEADS, HEAD_DIM).transpose(0, 2, 1, 3)

    qh, kh, vh = split_heads(q), split_heads(k), split_heads(v)
    energy = jnp.einsum("bhqd,bhkd->bhqk", qh, kh)

    wf = jax.nn.sigmoid(q[..., : 4 * HEAD_DIM] @ p["dgw1"] + p["dgb1"])   # (B,n,1)
    wb = jax.nn.sigmoid(q[..., 4 * HEAD_DIM:] @ p["dgw2"] + p["dgb2"])    # (B,n,1)
    energy = energy.at[:, :4].add(wf[:, None, :, :] * dg1)
    energy = energy.at[:, 4:].add(wb[:, None, :, :] * dg2)

    att = jax.nn.softmax(energy / (EMB ** 0.5), axis=-1)
    out = jnp.einsum("bhqk,bhkd->bhqd", att, vh)
    out = out.transpose(0, 2, 1, 3).reshape(B, n, E)
    return x + (out @ p["proj_w"] + p["proj_b"])


def make_params(key):
    ks = jax.random.split(key, 18)
    s = 0.2
    return {
        "qp_w": s * jax.random.normal(ks[0], (EMB, P_DIM), jnp.float32),
        "qp_b": s * jax.random.normal(ks[1], (P_DIM,), jnp.float32),
        "qg_w": s * jax.random.normal(ks[2], (EMB, G_DIM), jnp.float32),
        "qg_b": s * jax.random.normal(ks[3], (G_DIM,), jnp.float32),
        "kp_w": s * jax.random.normal(ks[4], (EMB, P_DIM), jnp.float32),
        "kp_b": s * jax.random.normal(ks[5], (P_DIM,), jnp.float32),
        "kg_w": s * jax.random.normal(ks[6], (EMB, G_DIM), jnp.float32),
        "kg_b": s * jax.random.normal(ks[7], (G_DIM,), jnp.float32),
        "vp_w": s * jax.random.normal(ks[8], (EMB, P_DIM), jnp.float32),
        "vp_b": s * jax.random.normal(ks[9], (P_DIM,), jnp.float32),
        "vg_w": s * jax.random.normal(ks[10], (EMB, G_DIM), jnp.float32),
        "vg_b": s * jax.random.normal(ks[11], (G_DIM,), jnp.float32),
        "dgw1": s * jax.random.normal(ks[12], (4 * HEAD_DIM, 1), jnp.float32),
        "dgb1": s * jax.random.normal(ks[13], (1,), jnp.float32),
        "dgw2": s * jax.random.normal(ks[14], (4 * HEAD_DIM, 1), jnp.float32),
        "dgb2": s * jax.random.normal(ks[15], (1,), jnp.float32),
        "proj_w": s * jax.random.normal(ks[16], (EMB, EMB), jnp.float32),
        "proj_b": s * jax.random.normal(ks[17], (EMB,), jnp.float32),
    }


if __name__ == "__main__":
    key = jax.random.PRNGKey(0)
    k_x, k_d1, k_d2, k_p = jax.random.split(key, 4)

    # bf16 MXU operands (FAN + attention dots) -> compare against the f32 reference at 3e-2
    TOL = 3e-2

    B, n = 2, 8
    x = jax.random.normal(k_x, (B, n, EMB), jnp.float32)
    dg1 = jax.random.normal(k_d1, (B, 4, n, n), jnp.float32)
    dg2 = jax.random.normal(k_d2, (B, 4, n, n), jnp.float32)
    params = make_params(k_p)

    out = jax.block_until_ready(residual_faa(x, dg1, dg2, params))
    ref = jax.block_until_ready(reference(x, dg1, dg2, params))
    assert out.shape == (B, n, EMB)
    np.testing.assert_allclose(np.asarray(out), np.asarray(ref), rtol=TOL, atol=TOL)

    # multi-block grid + padded last block path (B=5, batch_tile=3 -> bt=3, b_pad=6, 2 steps)
    B2 = 5
    kx2, kd1b, kd2b = jax.random.split(jax.random.PRNGKey(1), 3)
    x_b = jax.random.normal(kx2, (B2, n, EMB), jnp.float32)
    dg1_b = jax.random.normal(kd1b, (B2, 4, n, n), jnp.float32)
    dg2_b = jax.random.normal(kd2b, (B2, 4, n, n), jnp.float32)
    out_b = jax.block_until_ready(residual_faa(x_b, dg1_b, dg2_b, params, batch_tile=3))
    ref_b = jax.block_until_ready(reference(x_b, dg1_b, dg2_b, params))
    np.testing.assert_allclose(np.asarray(out_b), np.asarray(ref_b), rtol=TOL, atol=TOL)

    # divisor-of-B path (no padding): B=5, batch_tile=2 -> bt=1, 5 grid steps
    out_c = jax.block_until_ready(residual_faa(x_b, dg1_b, dg2_b, params, batch_tile=2))
    np.testing.assert_allclose(np.asarray(out_c), np.asarray(ref_b), rtol=TOL, atol=TOL)

    print("KERNEL_OK")
</pallas_src>

<mosaic_0001>
module attributes {stable_mosaic.version = 11 : i64} {
  func.func @faa_residual_kernel(%arg0: i32, %arg1: memref<8x40xf32, #tpu.memory_space<vmem>>, %arg2: memref<1x8x8x8xf32, #tpu.memory_space<vmem>>, %arg3: memref<40x120xbf16, #tpu.memory_space<vmem>>, %arg4: memref<1x120xf32, #tpu.memory_space<vmem>>, %arg5: memref<3x120xf32, #tpu.memory_space<vmem>>, %arg6: memref<8x40xf32, #tpu.memory_space<vmem>>, %arg7: memref<2x40xf32, #tpu.memory_space<vmem>>, %arg8: memref<2xf32, #tpu.memory_space<smem>>, %arg9: memref<40x40xf32, #tpu.memory_space<vmem>>, %arg10: memref<1x40xf32, #tpu.memory_space<vmem>>, %arg11: memref<8x40xf32, #tpu.memory_space<vmem>>) attributes {dimension_semantics = [#tpu.dimension_semantics<parallel>], iteration_bounds = array<i64: 2>, scalar_prefetch = 0 : i64, scratch_operands = 0 : i64, tpu.core_type = #tpu.core_type<tc>, window_params = [{transform_indices = @transform_0, window_bounds = array<i64: 8, 40>}, {transform_indices = @transform_1, window_bounds = array<i64: 1, 8, 8, 8>}, {pipeline_mode = #tpu.pipeline_mode<synchronous>, transform_indices = @transform_2, window_bounds = array<i64: 40, 120>}, {pipeline_mode = #tpu.pipeline_mode<synchronous>, transform_indices = @transform_3, window_bounds = array<i64: 1, 120>}, {pipeline_mode = #tpu.pipeline_mode<synchronous>, transform_indices = @transform_4, window_bounds = array<i64: 3, 120>}, {pipeline_mode = #tpu.pipeline_mode<synchronous>, transform_indices = @transform_5, window_bounds = array<i64: 8, 40>}, {pipeline_mode = #tpu.pipeline_mode<synchronous>, transform_indices = @transform_6, window_bounds = array<i64: 2, 40>}, {transform_indices = @transform_7, window_bounds = array<i64: 2>}, {pipeline_mode = #tpu.pipeline_mode<synchronous>, transform_indices = @transform_8, window_bounds = array<i64: 40, 40>}, {pipeline_mode = #tpu.pipeline_mode<synchronous>, transform_indices = @transform_9, window_bounds = array<i64: 1, 40>}, {transform_indices = @transform_10, window_bounds = array<i64: 8, 40>}]} {
    %c0 = arith.constant 0 : index
    %c0_0 = arith.constant 0 : index
    %0 = vector.load %arg1[%c0, %c0_0] : memref<8x40xf32, #tpu.memory_space<vmem>>, vector<8x40xf32>
    %1 = arith.truncf %0 : vector<8x40xf32> to vector<8x40xbf16>
    %c0_1 = arith.constant 0 : index
    %c0_2 = arith.constant 0 : index
    %2 = vector.load %arg3[%c0_1, %c0_2] : memref<40x120xbf16, #tpu.memory_space<vmem>>, vector<40x120xbf16>
    %cst = arith.constant dense<0.000000e+00> : vector<8x120xf32>
    %3 = tpu.matmul %1, %2, %cst {dimension_numbers = #tpu.dot_dimension_numbers<[1], [0], [0], [1], [0, 0, 1, 1], [], []>} : vector<8x40xbf16>, vector<40x120xbf16>, vector<8x120xf32> -> vector<8x120xf32>
    %c0_3 = arith.constant 0 : index
    %c0_4 = arith.constant 0 : index
    %4 = vector.load %arg4[%c0_3, %c0_4] : memref<1x120xf32, #tpu.memory_space<vmem>>, vector<1x120xf32>
    %5 = vector.broadcast %4 : vector<1x120xf32> to vector<8x120xf32>
    %6 = arith.addf %3, %5 : vector<8x120xf32>
    %c0_5 = arith.constant 0 : index
    %c0_6 = arith.constant 0 : index
    %7 = vector.load %arg5[%c0_5, %c0_6] : memref<3x120xf32, #tpu.memory_space<vmem>>, vector<3x120xf32>
    %8 = vector.extract_strided_slice %7 {offsets = [0, 0], sizes = [1, 120], strides = [1, 1]} : vector<3x120xf32> to vector<1x120xf32>
    %9 = math.cos %6 : vector<8x120xf32>
    %10 = vector.broadcast %8 : vector<1x120xf32> to vector<8x120xf32>
    %11 = arith.mulf %10, %9 : vector<8x120xf32>
    %12 = vector.extract_strided_slice %7 {offsets = [1, 0], sizes = [1, 120], strides = [1, 1]} : vector<3x120xf32> to vector<1x120xf32>
    %13 = math.sin %6 : vector<8x120xf32>
    %14 = vector.broadcast %12 : vector<1x120xf32> to vector<8x120xf32>
    %15 = arith.mulf %14, %13 : vector<8x120xf32>
    %16 = arith.addf %11, %15 : vector<8x120xf32>
    %17 = vector.extract_strided_slice %7 {offsets = [2, 0], sizes = [1, 120], strides = [1, 1]} : vector<3x120xf32> to vector<1x120xf32>
    %18 = vector.broadcast %17 : vector<1x120xf32> to vector<8x120xf32>
    %19 = arith.mulf %18, %6 : vector<8x120xf32>
    %20 = arith.addf %16, %19 : vector<8x120xf32>
    %21 = vector.extract_strided_slice %20 {offsets = [0, 0], sizes = [8, 40], strides = [1, 1]} : vector<8x120xf32> to vector<8x40xf32>
    %22 = vector.shape_cast %21 : vector<8x40xf32> to vector<1x8x40xf32>
    %23 = vector.extract_strided_slice %20 {offsets = [0, 40], sizes = [8, 40], strides = [1, 1]} : vector<8x120xf32> to vector<8x40xf32>
    %24 = vector.shape_cast %23 : vector<8x40xf32> to vector<1x8x40xf32>
    %25 = vector.extract_strided_slice %20 {offsets = [0, 80], sizes = [8, 40], strides = [1, 1]} : vector<8x120xf32> to vector<8x40xf32>
    %26 = vector.shape_cast %25 : vector<8x40xf32> to vector<1x8x40xf32>
    %c0_7 = arith.constant 0 : index
    %c0_8 = arith.constant 0 : index
    %27 = vector.load %arg7[%c0_7, %c0_8] : memref<2x40xf32, #tpu.memory_space<vmem>>, vector<2x40xf32>
    %28 = vector.extract_strided_slice %27 {offsets = [0, 0], sizes = [1, 40], strides = [1, 1]} : vector<2x40xf32> to vector<1x40xf32>
    %29 = vector.shape_cast %28 : vector<1x40xf32> to vector<1x1x40xf32>
    %30 = vector.broadcast %29 : vector<1x1x40xf32> to vector<1x8x40xf32>
    %31 = arith.mulf %22, %30 : vector<1x8x40xf32>
    %cst_9 = arith.constant dense<0.000000e+00> : vector<1x8xf32>
    %32 = vector.multi_reduction <add>, %31, %cst_9 [2] : vector<1x8x40xf32> to vector<1x8xf32>
    %33 = vector.shape_cast %32 : vector<1x8xf32> to vector<1x8x1xf32>
    %c0_10 = arith.constant 0 : index
    %34 = memref.load %arg8[%c0_10] : memref<2xf32, #tpu.memory_space<smem>>
    %35 = vector.broadcast %34 : f32 to vector<1x8x1xf32>
    %36 = arith.addf %33, %35 : vector<1x8x1xf32>
    %37 = arith.negf %36 : vector<1x8x1xf32>
    %38 = math.exp %37 : vector<1x8x1xf32>
    %cst_11 = arith.constant 1.000000e+00 : f32
    %39 = vector.broadcast %cst_11 : f32 to vector<1x8x1xf32>
    %40 = arith.addf %39, %38 : vector<1x8x1xf32>
    %41 = arith.divf %39, %40 : vector<1x8x1xf32>
    %42 = vector.extract_strided_slice %27 {offsets = [1, 0], sizes = [1, 40], strides = [1, 1]} : vector<2x40xf32> to vector<1x40xf32>
    %43 = vector.shape_cast %42 : vector<1x40xf32> to vector<1x1x40xf32>
    %44 = vector.broadcast %43 : vector<1x1x40xf32> to vector<1x8x40xf32>
    %45 = arith.mulf %22, %44 : vector<1x8x40xf32>
    %cst_12 = arith.constant dense<0.000000e+00> : vector<1x8xf32>
    %46 = vector.multi_reduction <add>, %45, %cst_12 [2] : vector<1x8x40xf32> to vector<1x8xf32>
    %47 = vector.shape_cast %46 : vector<1x8xf32> to vector<1x8x1xf32>
    %c1 = arith.constant 1 : index
    %48 = memref.load %arg8[%c1] : memref<2xf32, #tpu.memory_space<smem>>
    %49 = vector.broadcast %48 : f32 to vector<1x8x1xf32>
    %50 = arith.addf %47, %49 : vector<1x8x1xf32>
    %51 = arith.negf %50 : vector<1x8x1xf32>
    %52 = math.exp %51 : vector<1x8x1xf32>
    %cst_13 = arith.constant 1.000000e+00 : f32
    %53 = vector.broadcast %cst_13 : f32 to vector<1x8x1xf32>
    %54 = arith.addf %53, %52 : vector<1x8x1xf32>
    %55 = arith.divf %53, %54 : vector<1x8x1xf32>
    %c0_14 = arith.constant 0 : index
    %c0_15 = arith.constant 0 : index
    %56 = vector.load %arg6[%c0_14, %c0_15] : memref<8x40xf32, #tpu.memory_space<vmem>>, vector<8x40xf32>
    %57 = arith.truncf %24 : vector<1x8x40xf32> to vector<1x8x40xbf16>
    %58 = arith.truncf %26 : vector<1x8x40xf32> to vector<1x8x40xbf16>
    %59 = vector.shape_cast %22 : vector<1x8x40xf32> to vector<1x1x8x40xf32>
    %60 = vector.shape_cast %56 : vector<8x40xf32> to vector<1x8x1x40xf32>
    %61 = vector.broadcast %59 : vector<1x1x8x40xf32> to vector<1x8x8x40xf32>
    %62 = vector.broadcast %60 : vector<1x8x1x40xf32> to vector<1x8x8x40xf32>
    %63 = arith.mulf %61, %62 : vector<1x8x8x40xf32>
    %64 = vector.shape_cast %63 : vector<1x8x8x40xf32> to vector<1x64x40xf32>
    %65 = arith.truncf %64 : vector<1x64x40xf32> to vector<1x64x40xbf16>
    "tpu.trace_start"() <{level = 10 : i32, message = "bqd,bkd->bqk"}> : () -> ()
    %cst_16 = arith.constant dense<0.000000e+00> : vector<1x64x8xf32>
    %66 = tpu.matmul %65, %57, %cst_16 {dimension_numbers = #tpu.dot_dimension_numbers<[2], [2], [1], [1], [0, 0, 0, 1, 1, 1], [0], [0]>} : vector<1x64x40xbf16>, vector<1x8x40xbf16>, vector<1x64x8xf32> -> vector<1x64x8xf32>
    "tpu.trace_stop"() : () -> ()
    %67 = vector.shape_cast %66 : vector<1x64x8xf32> to vector<1x8x8x8xf32>
    %68 = tpu.iota {dimensions = array<i32: 1>} : vector<1x8x1x1xi32>
    %c4_i32 = arith.constant 4 : i32
    %69 = vector.broadcast %c4_i32 : i32 to vector<1x8x1x1xi32>
    %70 = arith.cmpi slt, %68, %69 : vector<1x8x1x1xi32>
    %71 = vector.shape_cast %41 : vector<1x8x1xf32> to vector<1x1x8x1xf32>
    %72 = vector.shape_cast %55 : vector<1x8x1xf32> to vector<1x1x8x1xf32>
    %73 = vector.shape_cast %70 : vector<1x8x1x1xi1> to vector<1x8x1x1xi1>
    %74 = vector.broadcast %73 : vector<1x8x1x1xi1> to vector<1x8x8x1xi1>
    %75 = vector.shape_cast %71 : vector<1x1x8x1xf32> to vector<1x1x8x1xf32>
    %76 = vector.broadcast %75 : vector<1x1x8x1xf32> to vector<1x8x8x1xf32>
    %77 = vector.shape_cast %72 : vector<1x1x8x1xf32> to vector<1x1x8x1xf32>
    %78 = vector.broadcast %77 : vector<1x1x8x1xf32> to vector<1x8x8x1xf32>
    %79 = arith.select %74, %76, %78 : vector<1x8x8x1xi1>, vector<1x8x8x1xf32>
    %c0_17 = arith.constant 0 : index
    %c0_18 = arith.constant 0 : index
    %c0_19 = arith.constant 0 : index
    %c0_20 = arith.constant 0 : index
    %80 = vector.load %arg2[%c0_17, %c0_18, %c0_19, %c0_20] : memref<1x8x8x8xf32, #tpu.memory_space<vmem>>, vector<1x8x8x8xf32>
    %81 = vector.broadcast %79 : vector<1x8x8x1xf32> to vector<1x8x8x8xf32>
    %82 = arith.mulf %81, %80 : vector<1x8x8x8xf32>
    %83 = arith.addf %67, %82 : vector<1x8x8x8xf32>
    %cst_21 = arith.constant 0.158113882 : f32
    %84 = vector.broadcast %cst_21 : f32 to vector<1x8x8x8xf32>
    %85 = arith.mulf %83, %84 : vector<1x8x8x8xf32>
    %cst_22 = arith.constant dense<0xFF800000> : vector<1x8x8xf32>
    %86 = vector.multi_reduction <maximumf>, %85, %cst_22 [3] : vector<1x8x8x8xf32> to vector<1x8x8xf32>
    %87 = vector.shape_cast %86 : vector<1x8x8xf32> to vector<1x8x8x1xf32>
    %88 = vector.broadcast %87 : vector<1x8x8x1xf32> to vector<1x8x8x8xf32>
    %89 = arith.subf %85, %88 : vector<1x8x8x8xf32>
    %90 = math.exp %89 : vector<1x8x8x8xf32>
    %cst_23 = arith.constant dense<0.000000e+00> : vector<1x8x8xf32>
    %91 = vector.multi_reduction <add>, %90, %cst_23 [3] : vector<1x8x8x8xf32> to vector<1x8x8xf32>
    %92 = vector.shape_cast %91 : vector<1x8x8xf32> to vector<1x8x8x1xf32>
    %93 = tpu.reciprocal %92 {approx = true} : vector<1x8x8x1xf32> -> vector<1x8x8x1xf32>
    %94 = vector.broadcast %93 : vector<1x8x8x1xf32> to vector<1x8x8x8xf32>
    %95 = arith.mulf %90, %94 : vector<1x8x8x8xf32>
    %96 = vector.shape_cast %95 : vector<1x8x8x8xf32> to vector<1x64x8xf32>
    %97 = arith.truncf %96 : vector<1x64x8xf32> to vector<1x64x8xbf16>
    "tpu.trace_start"() <{level = 10 : i32, message = "bqk,bkd->bqd"}> : () -> ()
    %cst_24 = arith.constant dense<0.000000e+00> : vector<1x64x40xf32>
    %98 = tpu.matmul %97, %58, %cst_24 {dimension_numbers = #tpu.dot_dimension_numbers<[2], [1], [1], [2], [0, 0, 0, 1, 1, 2], [0], [0]>} : vector<1x64x8xbf16>, vector<1x8x40xbf16>, vector<1x64x40xf32> -> vector<1x64x40xf32>
    "tpu.trace_stop"() : () -> ()
    %99 = vector.shape_cast %98 : vector<1x64x40xf32> to vector<1x8x8x40xf32>
    %100 = vector.shape_cast %56 : vector<8x40xf32> to vector<1x8x1x40xf32>
    %101 = vector.broadcast %100 : vector<1x8x1x40xf32> to vector<1x8x8x40xf32>
    %102 = arith.mulf %99, %101 : vector<1x8x8x40xf32>
    %cst_25 = arith.constant dense<0.000000e+00> : vector<1x8x40xf32>
    %103 = vector.multi_reduction <add>, %102, %cst_25 [1] : vector<1x8x8x40xf32> to vector<1x8x40xf32>
    %104 = vector.shape_cast %103 : vector<1x8x40xf32> to vector<8x40xf32>
    %c0_26 = arith.constant 0 : index
    %c0_27 = arith.constant 0 : index
    %105 = vector.load %arg9[%c0_26, %c0_27] : memref<40x40xf32, #tpu.memory_space<vmem>>, vector<40x40xf32>
    %cst_28 = arith.constant dense<0.000000e+00> : vector<8x40xf32>
    %106 = tpu.matmul %104, %105, %cst_28 {dimension_numbers = #tpu.dot_dimension_numbers<[1], [0], [0], [1], [0, 0, 1, 1], [], []>} : vector<8x40xf32>, vector<40x40xf32>, vector<8x40xf32> -> vector<8x40xf32>
    %c0_29 = arith.constant 0 : index
    %c0_30 = arith.constant 0 : index
    %107 = vector.load %arg10[%c0_29, %c0_30] : memref<1x40xf32, #tpu.memory_space<vmem>>, vector<1x40xf32>
    %108 = vector.broadcast %107 : vector<1x40xf32> to vector<8x40xf32>
    %109 = arith.addf %106, %108 : vector<8x40xf32>
    %110 = arith.addf %0, %109 : vector<8x40xf32>
    %c0_31 = arith.constant 0 : index
    %c0_32 = arith.constant 0 : index
    %111 = vector.load %arg11[%c0_31, %c0_32] : memref<8x40xf32, #tpu.memory_space<vmem>>, vector<8x40xf32>
    tpu.vector_store %arg11[%c0_31, %c0_32], %110 {strides = array<i32>} : memref<8x40xf32, #tpu.memory_space<vmem>>, vector<8x40xf32>,
    return
  }
  func.func @transform_0(%arg0: i32) -> (i32, i32) {
    %c0_i32 = arith.constant 0 : i32
    %c0_i32_0 = arith.constant 0 : i32
    return %arg0, %c0_i32 : i32, i32
  }
  func.func @transform_1(%arg0: i32) -> (i32, i32, i32, i32) {
    %c0_i32 = arith.constant 0 : i32
    %c0_i32_0 = arith.constant 0 : i32
    %c0_i32_1 = arith.constant 0 : i32
    %c0_i32_2 = arith.constant 0 : i32
    return %arg0, %c0_i32, %c0_i32_0, %c0_i32_1 : i32, i32, i32, i32
  }
  func.func @transform_2(%arg0: i32) -> (i32, i32) {
    %c0_i32 = arith.constant 0 : i32
    %c0_i32_0 = arith.constant 0 : i32
    %c0_i32_1 = arith.constant 0 : i32
    return %c0_i32, %c0_i32_0 : i32, i32
  }
  func.func @transform_3(%arg0: i32) -> (i32, i32) {
    %c0_i32 = arith.constant 0 : i32
    %c0_i32_0 = arith.constant 0 : i32
    %c0_i32_1 = arith.constant 0 : i32
    return %c0_i32, %c0_i32_0 : i32, i32
  }
  func.func @transform_4(%arg0: i32) -> (i32, i32) {
    %c0_i32 = arith.constant 0 : i32
    %c0_i32_0 = arith.constant 0 : i32
    %c0_i32_1 = arith.constant 0 : i32
    return %c0_i32, %c0_i32_0 : i32, i32
  }
  func.func @transform_5(%arg0: i32) -> (i32, i32) {
    %c0_i32 = arith.constant 0 : i32
    %c0_i32_0 = arith.constant 0 : i32
    %c0_i32_1 = arith.constant 0 : i32
    return %c0_i32, %c0_i32_0 : i32, i32
  }
  func.func @transform_6(%arg0: i32) -> (i32, i32) {
    %c0_i32 = arith.constant 0 : i32
    %c0_i32_0 = arith.constant 0 : i32
    %c0_i32_1 = arith.constant 0 : i32
    return %c0_i32, %c0_i32_0 : i32, i32
  }
  func.func @transform_7(%arg0: i32) -> i32 {
    %c0_i32 = arith.constant 0 : i32
    %c0_i32_0 = arith.constant 0 : i32
    return %c0_i32 : i32
  }
  func.func @transform_8(%arg0: i32) -> (i32, i32) {
    %c0_i32 = arith.constant 0 : i32
    %c0_i32_0 = arith.constant 0 : i32
    %c0_i32_1 = arith.constant 0 : i32
    return %c0_i32, %c0_i32_0 : i32, i32
  }
  func.func @transform_9(%arg0: i32) -> (i32, i32) {
    %c0_i32 = arith.constant 0 : i32
    %c0_i32_0 = arith.constant 0 : i32
    %c0_i32_1 = arith.constant 0 : i32
    return %c0_i32, %c0_i32_0 : i32, i32
  }
  func.func @transform_10(%arg0: i32) -> (i32, i32) {
    %c0_i32 = arith.constant 0 : i32
    %c0_i32_0 = arith.constant 0 : i32
    return %arg0, %c0_i32 : i32, i32
  }
}

</mosaic_0001>

<llo_original>
// kernel: tpu_custom_call.1
$region0: #{tpu_custom_call.1}
  #allocation0 [shape = 'u32[]', space=smem, size = 0x4, offset = 0x4, fixed_abs, tag = 'smem constant byte address 0x4 - core index']
  #allocation1 [shape = 'u32[144,128]{1,0:T(1,128)}', space=vmem, size = 0x12000, scoped, tag = 'internal scratch']
  %s0 = inlined_call_operand.hbm [shape: f32[16,40], index: 0, kind: input, shape index: {}]
  %s1 = inlined_call_operand.hbm [shape: f32[2,8,8,8], index: 1, kind: input, shape index: {}]
  %s2 = inlined_call_operand.hbm [shape: bf16[40,120], index: 2, kind: input, shape index: {}]
  %s3 = inlined_call_operand.vmem [shape: f32[1,120], index: 3, kind: input, shape index: {}]
  %s4 = inlined_call_operand.vmem [shape: f32[3,120], index: 4, kind: input, shape index: {}]
  %s5 = inlined_call_operand.vmem [shape: f32[8,40], index: 5, kind: input, shape index: {}]
  %s6 = inlined_call_operand.vmem [shape: f32[2,40], index: 6, kind: input, shape index: {}]
  %s7 = inlined_call_operand.vmem [shape: f32[2], index: 7, kind: input, shape index: {}]
  %s8 = inlined_call_operand.hbm [shape: f32[40,40], index: 8, kind: input, shape index: {}]
  %s9 = inlined_call_operand.vmem [shape: f32[1,40], index: 9, kind: input, shape index: {}]
  %s10 = inlined_call_operand.hbm [shape: f32[16,40], index: 10, kind: output, shape index: {}]
  %s11 = sld [smem:[#allocation0]]
  $region93: #{tpu_custom_call.1} parent=0
    _
  %s13 = ssub.s32 1, %s11
  %s14 = scalar_select 0, %s13, %s11
  $region1: #{tpu_custom_call.1} parent=0
    #allocation2 [shape = 'u8[8192]{0}', space=vmem, size = 0x2000, scoped, tag = 'input window, operand 0']
    #allocation3 [shape = 's32[2]{0}', space=sflag, size = 0x8, scoped, tag = 'scoped memory for tpu_custom_call.1']
    #allocation4 [shape = 's32[2]{0}', space=sflag, size = 0x8, scoped, tag = 'scoped memory for tpu_custom_call.1']
    #allocation5 [shape = 's32[2]{0}', space=sflag, size = 0x8, scoped, tag = 'scoped memory for tpu_custom_call.1']
    #allocation6 [shape = 'u8[65536]{0}', space=vmem, size = 0x10000, scoped, tag = 'input window, operand 1']
    #allocation7 [shape = 's32[2]{0}', space=sflag, size = 0x8, scoped, tag = 'scoped memory for tpu_custom_call.1']
    #allocation8 [shape = 'u8[10240]{0}', space=vmem, size = 0x2800, scoped, tag = 'input window, operand 2, single buffered']
    #allocation9 [shape = 'u8[512]{0}', space=smem, size = 0x200, scoped, tag = 'input window, operand 7, single buffered']
    #allocation10 [shape = 'u8[20480]{0}', space=vmem, size = 0x5000, scoped, tag = 'input window, operand 8, single buffered']
    #allocation11 [shape = 's32[1]{0}', space=sflag, size = 0x4, scoped, tag = 'scoped memory for tpu_custom_call.1']
    #allocation12 [shape = 'u8[8192]{0}', space=vmem, size = 0x2000, scoped, tag = 'output window, operand 0']
    %15 = vsyncpa [#allocation3], 0
    %s16 = scalar_lea.sflag [#allocation3], 1
    %17 = vsyncpa %s16, 0
    %18 = vsyncpa [#allocation7], 0
    %s19 = scalar_lea.sflag [#allocation7], 1
    %20 = vsyncpa %s19, 0
    %21 = vsyncpa [#allocation5], 0
    %22 = vsyncpa [#allocation11], 0
    %23 = vsyncpa [#allocation4], 0
    %s24 = scalar_lea.sflag [#allocation4], 1
    %25 = vsyncpa %s24, 0
    loop: start=0, step=1, limit=4
    $region2: #{tpu_custom_call.1} parent=1 // loop_pre_header
      _
    $region3: #{tpu_custom_call.1} parent=1 // loop_header
      %s27 = sphi 0, %s31
      %p28 = scmp.ge.s32.totalorder %s27, 4
      %s37 = sphi 0, %s39
      %s40 = sphi 0, %s37
      %s41 = sphi 0, %s40
      %s57 = sphi 0, %s41
      %s63 = sphi 0, %s65
      %s66 = sphi 0, %s63
      %s67 = sphi 0, %s66
      %s83 = sphi 0, %s67
      %s87 = sphi 0, %s87
      %s89 = sphi 0, %s87
      %s90 = sphi 0, %s89
      %s104 = sphi 0, %s90
      %s108 = sphi 0, %s108
      %s110 = sphi 0, %s108
      %s111 = sphi 0, %s110
      %s125 = sphi 0, %s111
      %s129 = sphi 0, %s129
      %s131 = sphi 0, %s129
      %s132 = sphi 0, %s131
      %s146 = sphi 0, %s132
      %s150 = sphi 0, %s150
      %s152 = sphi 0, %s150
      %s153 = sphi 0, %s152
      %s167 = sphi 0, %s153
      %s171 = sphi 0, %s171
      %s173 = sphi 0, %s171
      %s174 = sphi 0, %s173
      %s188 = sphi 0, %s174
      %s192 = sphi 0, %s192
      %s194 = sphi 0, %s192
      %s195 = sphi 0, %s194
      %s209 = sphi 0, %s195
      %s213 = sphi 0, %s213
      %s215 = sphi 0, %s213
      %s216 = sphi 0, %s215
      %s230 = sphi 0, %s216
      %s234 = sphi 0, %s234
      %s236 = sphi 0, %s234
      %s237 = sphi 0, %s236
      %s251 = sphi 0, %s237
      %s257 = sphi 0, %s259
      %s260 = sphi 0, %s257
      %s261 = sphi 0, %s260
      %s277 = sphi 0, %s261
    $region4: #{tpu_custom_call.1} parent=1 // loop_header_branch
      %30 = sbr.rel (%p28) target = $region8
    $region5: #{tpu_custom_call.1} parent=1 // loop_body
      %s32 = ssub.s32 %s27, 1
      %s33 = ssub.s32 %s27, 2
      %s34 = sadd.s32 %s27, 1
      %s35 = ssub.s32 %s27, %s34
      %p36 = scmp.eq.s32.totalorder %s35, 0
      %s38 = sadd.s32 %s37, 1
      %s39 = scalar_select %p36, %s37, %s38
      %p42 = pneg %p36
      %p43 = scmp.eq.s32.totalorder %s27, 1
      %p44 = por %p42, %p43
      %p45 = scmp.ne.s32.totalorder %s37, %s40
      %p46 = scmp.eq.s32.totalorder %s27, 0
      %p47 = por %p45, %p46
      %p48 = scmp.ne.s32.totalorder %s37, %s40
      %p49 = scmp.eq.s32.totalorder %s32, 1
      %p50 = por %p48, %p49
      %p51 = scmp.ne.s32.totalorder %s40, %s41
      %p52 = scmp.eq.s32.totalorder %s32, 0
      %p53 = por %p51, %p52
      %p54 = scmp.ne.s32.totalorder %s40, %s41
      %p55 = scmp.eq.s32.totalorder %s33, 1
      %p56 = por %p54, %p55
      %p58 = scmp.ne.s32.totalorder %s41, %s57
      %p59 = scmp.eq.s32.totalorder %s33, 0
      %p60 = por %p58, %p59
      %s61 = ssub.s32 %s27, %s34
      %p62 = scmp.eq.s32.totalorder %s61, 0
      %s64 = sadd.s32 %s63, 1
      %s65 = scalar_select %p62, %s63, %s64
      %p68 = pneg %p62
      %p69 = scmp.eq.s32.totalorder %s27, 1
      %p70 = por %p68, %p69
      %p71 = scmp.ne.s32.totalorder %s63, %s66
      %p72 = scmp.eq.s32.totalorder %s27, 0
      %p73 = por %p71, %p72
      %p74 = scmp.ne.s32.totalorder %s63, %s66
      %p75 = scmp.eq.s32.totalorder %s32, 1
      %p76 = por %p74, %p75
      %p77 = scmp.ne.s32.totalorder %s66, %s67
      %p78 = scmp.eq.s32.totalorder %s32, 0
      %p79 = por %p77, %p78
      %p80 = scmp.ne.s32.totalorder %s66, %s67
      %p81 = scmp.eq.s32.totalorder %s33, 1
      %p82 = por %p80, %p81
      %p84 = scmp.ne.s32.totalorder %s67, %s83
      %p85 = scmp.eq.s32.totalorder %s33, 0
      %p86 = por %p84, %p85
      %s88 = sadd.s32 %s87, 1
      %p91 = scmp.eq.s32.totalorder %s27, 1
      %p92 = scmp.ne.s32.totalorder %s87, %s89
      %p93 = scmp.eq.s32.totalorder %s27, 0
      %p94 = por %p92, %p93
      %p95 = scmp.ne.s32.totalorder %s87, %s89
      %p96 = scmp.eq.s32.totalorder %s32, 1
      %p97 = por %p95, %p96
      %p98 = scmp.ne.s32.totalorder %s89, %s90
      %p99 = scmp.eq.s32.totalorder %s32, 0
      %p100 = por %p98, %p99
      %p101 = scmp.ne.s32.totalorder %s89, %s90
      %p102 = scmp.eq.s32.totalorder %s33, 1
      %p103 = por %p101, %p102
      %p105 = scmp.ne.s32.totalorder %s90, %s104
      %p106 = scmp.eq.s32.totalorder %s33, 0
      %p107 = por %p105, %p106
      %s109 = sadd.s32 %s108, 1
      %p112 = scmp.eq.s32.totalorder %s27, 1
      %p113 = scmp.ne.s32.totalorder %s108, %s110
      %p114 = scmp.eq.s32.totalorder %s27, 0
      %p115 = por %p113, %p114
      %p116 = scmp.ne.s32.totalorder %s108, %s110
      %p117 = scmp.eq.s32.totalorder %s32, 1
      %p118 = por %p116, %p117
      %p119 = scmp.ne.s32.totalorder %s110, %s111
      %p120 = scmp.eq.s32.totalorder %s32, 0
      %p121 = por %p119, %p120
      %p122 = scmp.ne.s32.totalorder %s110, %s111
      %p123 = scmp.eq.s32.totalorder %s33, 1
      %p124 = por %p122, %p123
      %p126 = scmp.ne.s32.totalorder %s111, %s125
      %p127 = scmp.eq.s32.totalorder %s33, 0
      %p128 = por %p126, %p127
      %s130 = sadd.s32 %s129, 1
      %p133 = scmp.eq.s32.totalorder %s27, 1
      %p134 = scmp.ne.s32.totalorder %s129, %s131
      %p135 = scmp.eq.s32.totalorder %s27, 0
      %p136 = por %p134, %p135
      %p137 = scmp.ne.s32.totalorder %s129, %s131
      %p138 = scmp.eq.s32.totalorder %s32, 1
      %p139 = por %p137, %p138
      %p140 = scmp.ne.s32.totalorder %s131, %s132
      %p141 = scmp.eq.s32.totalorder %s32, 0
      %p142 = por %p140, %p141
      %p143 = scmp.ne.s32.totalorder %s131, %s132
      %p144 = scmp.eq.s32.totalorder %s33, 1
      %p145 = por %p143, %p144
      %p147 = scmp.ne.s32.totalorder %s132, %s146
      %p148 = scmp.eq.s32.totalorder %s33, 0
      %p149 = por %p147, %p148
      %s151 = sadd.s32 %s150, 1
      %p154 = scmp.eq.s32.totalorder %s27, 1
      %p155 = scmp.ne.s32.totalorder %s150, %s152
      %p156 = scmp.eq.s32.totalorder %s27, 0
      %p157 = por %p155, %p156
      %p158 = scmp.ne.s32.totalorder %s150, %s152
      %p159 = scmp.eq.s32.totalorder %s32, 1
      %p160 = por %p158, %p159
      %p161 = scmp.ne.s32.totalorder %s152, %s153
      %p162 = scmp.eq.s32.totalorder %s32, 0
      %p163 = por %p161, %p162
      %p164 = scmp.ne.s32.totalorder %s152, %s153
      %p165 = scmp.eq.s32.totalorder %s33, 1
      %p166 = por %p164, %p165
      %p168 = scmp.ne.s32.totalorder %s153, %s167
      %p169 = scmp.eq.s32.totalorder %s33, 0
      %p170 = por %p168, %p169
      %s172 = sadd.s32 %s171, 1
      %p175 = scmp.eq.s32.totalorder %s27, 1
      %p176 = scmp.ne.s32.totalorder %s171, %s173
      %p177 = scmp.eq.s32.totalorder %s27, 0
      %p178 = por %p176, %p177
      %p179 = scmp.ne.s32.totalorder %s171, %s173
      %p180 = scmp.eq.s32.totalorder %s32, 1
      %p181 = por %p179, %p180
      %p182 = scmp.ne.s32.totalorder %s173, %s174
      %p183 = scmp.eq.s32.totalorder %s32, 0
      %p184 = por %p182, %p183
      %p185 = scmp.ne.s32.totalorder %s173, %s174
      %p186 = scmp.eq.s32.totalorder %s33, 1
      %p187 = por %p185, %p186
      %p189 = scmp.ne.s32.totalorder %s174, %s188
      %p190 = scmp.eq.s32.totalorder %s33, 0
      %p191 = por %p189, %p190
      %s193 = sadd.s32 %s192, 1
      %p196 = scmp.eq.s32.totalorder %s27, 1
      %p197 = scmp.ne.s32.totalorder %s192, %s194
      %p198 = scmp.eq.s32.totalorder %s27, 0
      %p199 = por %p197, %p198
      %p200 = scmp.ne.s32.totalorder %s192, %s194
      %p201 = scmp.eq.s32.totalorder %s32, 1
      %p202 = por %p200, %p201
      %p203 = scmp.ne.s32.totalorder %s194, %s195
      %p204 = scmp.eq.s32.totalorder %s32, 0
      %p205 = por %p203, %p204
      %p206 = scmp.ne.s32.totalorder %s194, %s195
      %p207 = scmp.eq.s32.totalorder %s33, 1
      %p208 = por %p206, %p207
      %p210 = scmp.ne.s32.totalorder %s195, %s209
      %p211 = scmp.eq.s32.totalorder %s33, 0
      %p212 = por %p210, %p211
      %s214 = sadd.s32 %s213, 1
      %p217 = scmp.eq.s32.totalorder %s27, 1
      %p218 = scmp.ne.s32.totalorder %s213, %s215
      %p219 = scmp.eq.s32.totalorder %s27, 0
      %p220 = por %p218, %p219
      %p221 = scmp.ne.s32.totalorder %s213, %s215
      %p222 = scmp.eq.s32.totalorder %s32, 1
      %p223 = por %p221, %p222
      %p224 = scmp.ne.s32.totalorder %s215, %s216
      %p225 = scmp.eq.s32.totalorder %s32, 0
      %p226 = por %p224, %p225
      %p227 = scmp.ne.s32.totalorder %s215, %s216
      %p228 = scmp.eq.s32.totalorder %s33, 1
      %p229 = por %p227, %p228
      %p231 = scmp.ne.s32.totalorder %s216, %s230
      %p232 = scmp.eq.s32.totalorder %s33, 0
      %p233 = por %p231, %p232
      %s235 = sadd.s32 %s234, 1
      %p238 = scmp.eq.s32.totalorder %s27, 1
      %p239 = scmp.ne.s32.totalorder %s234, %s236
      %p240 = scmp.eq.s32.totalorder %s27, 0
      %p241 = por %p239, %p240
      %p242 = scmp.ne.s32.totalorder %s234, %s236
      %p243 = scmp.eq.s32.totalorder %s32, 1
      %p244 = por %p242, %p243
      %p245 = scmp.ne.s32.totalorder %s236, %s237
      %p246 = scmp.eq.s32.totalorder %s32, 0
      %p247 = por %p245, %p246
      %p248 = scmp.ne.s32.totalorder %s236, %s237
      %p249 = scmp.eq.s32.totalorder %s33, 1
      %p250 = por %p248, %p249
      %p252 = scmp.ne.s32.totalorder %s237, %s251
      %p253 = scmp.eq.s32.totalorder %s33, 0
      %p254 = por %p252, %p253
      %s255 = ssub.s32 %s27, %s34
      %p256 = scmp.eq.s32.totalorder %s255, 0
      %s258 = sadd.s32 %s257, 1
      %s259 = scalar_select %p256, %s257, %s258
      %p262 = pneg %p256
      %p263 = scmp.eq.s32.totalorder %s27, 1
      %p264 = por %p262, %p263
      %p265 = scmp.ne.s32.totalorder %s257, %s260
      %p266 = scmp.eq.s32.totalorder %s27, 0
      %p267 = por %p265, %p266
      %p268 = scmp.ne.s32.totalorder %s257, %s260
      %p269 = scmp.eq.s32.totalorder %s32, 1
      %p270 = por %p268, %p269
      %p271 = scmp.ne.s32.totalorder %s260, %s261
      %p272 = scmp.eq.s32.totalorder %s32, 0
      %p273 = por %p271, %p272
      %p274 = scmp.ne.s32.totalorder %s260, %s261
      %p275 = scmp.eq.s32.totalorder %s33, 1
      %p276 = por %p274, %p275
      %p278 = scmp.ne.s32.totalorder %s261, %s277
      %p279 = scmp.eq.s32.totalorder %s33, 0
      %p280 = por %p278, %p279
      %p281 = scmp.le.s32.totalorder 1, %s27
      %p282 = scmp.lt.s32.totalorder %s27, 3
      %p283 = pnand %p281, %p282
      %p284 = pneg %p283
      // Predicated region
      $region9: #{tpu_custom_call.1} parent=5 // pred_check
        _
      $region10: #{tpu_custom_call.1} parent=5 // pred_check_branch
        %286 = sbr.rel (%p283) target = $region12
      $region11: #{tpu_custom_call.1} parent=5 // pred_region
        %s287 = ssub.s32 %s27, 1
        // Predicated region
        $region13: #{tpu_custom_call.1} parent=11 // pred_check
          %p288 = pneg %p100
        $region14: #{tpu_custom_call.1} parent=11 // pred_check_branch
          %290 = sbr.rel (%p288) target = $region16
        $region15: #{tpu_custom_call.1} parent=11 // pred_region
          %s292 = ssub.s32 320, 320
          %293 = vsyncadd [#allocation7], %s292
          %s294 = sshll.u32 [#allocation8], 4
          %s295 = int_to_ptr.vmem [resolvable:$true] %s294
          %300 = dma.hbm_to_vmem [thread:$0]  %s2, 320, %s295, [#allocation7], 64, 64, 4
        $region16: #{tpu_custom_call.1} parent=11 // pred_fallthru
          _
        // Predicated region
        $region17: #{tpu_custom_call.1} parent=11 // pred_check
          %p301 = pneg %p121
        $region18: #{tpu_custom_call.1} parent=11 // pred_check_branch
          %303 = sbr.rel (%p301) target = $region20
        $region19: #{tpu_custom_call.1} parent=11 // pred_region
          _
        $region20: #{tpu_custom_call.1} parent=11 // pred_fallthru
          _
        // Predicated region
        $region21: #{tpu_custom_call.1} parent=11 // pred_check
          %p304 = pneg %p142
        $region22: #{tpu_custom_call.1} parent=11 // pred_check_branch
          %306 = sbr.rel (%p304) target = $region24
        $region23: #{tpu_custom_call.1} parent=11 // pred_region
          _
        $region24: #{tpu_custom_call.1} parent=11 // pred_fallthru
          _
        // Predicated region
        $region25: #{tpu_custom_call.1} parent=11 // pred_check
          %p307 = pneg %p163
        $region26: #{tpu_custom_call.1} parent=11 // pred_check_branch
          %309 = sbr.rel (%p307) target = $region28
        $region27: #{tpu_custom_call.1} parent=11 // pred_region
          _
        $region28: #{tpu_custom_call.1} parent=11 // pred_fallthru
          _
        // Predicated region
        $region29: #{tpu_custom_call.1} parent=11 // pred_check
          %p310 = pneg %p184
        $region30: #{tpu_custom_call.1} parent=11 // pred_check_branch
          %312 = sbr.rel (%p310) target = $region32
        $region31: #{tpu_custom_call.1} parent=11 // pred_region
          _
        $region32: #{tpu_custom_call.1} parent=11 // pred_fallthru
          _
        // Predicated region
        $region33: #{tpu_custom_call.1} parent=11 // pred_check
          %p313 = pneg %p205
        $region34: #{tpu_custom_call.1} parent=11 // pred_check_branch
          %315 = sbr.rel (%p313) target = $region36
        $region35: #{tpu_custom_call.1} parent=11 // pred_region
          %s317 = ssub.s32 16, 16
          %318 = vsyncadd [#allocation5], %s317
          %s320 = sshll.u32 %s7, 4
          %s321 = int_to_ptr.vmem [resolvable:$true] %s320
          %323 = dma.vmem_to_smem %s321, 16, [#allocation9], [#allocation5]
        $region36: #{tpu_custom_call.1} parent=11 // pred_fallthru
          _
        // Predicated region
        $region37: #{tpu_custom_call.1} parent=11 // pred_check
          %p324 = pneg %p226
        $region38: #{tpu_custom_call.1} parent=11 // pred_check_branch
          %326 = sbr.rel (%p324) target = $region40
        $region39: #{tpu_custom_call.1} parent=11 // pred_region
          %s328 = ssub.s32 640, 640
          %329 = vsyncadd [#allocation11], %s328
          %s330 = sshll.u32 [#allocation10], 4
          %s331 = int_to_ptr.vmem [resolvable:$true] %s330
          %336 = dma.hbm_to_vmem [thread:$0]  %s8, 640, %s331, [#allocation11], 128, 128, 8
        $region40: #{tpu_custom_call.1} parent=11 // pred_fallthru
          _
        // Predicated region
        $region41: #{tpu_custom_call.1} parent=11 // pred_check
          %p337 = pneg %p247
        $region42: #{tpu_custom_call.1} parent=11 // pred_check_branch
          %339 = sbr.rel (%p337) target = $region44
        $region43: #{tpu_custom_call.1} parent=11 // pred_region
          _
        $region44: #{tpu_custom_call.1} parent=11 // pred_fallthru
          _
      $region12: #{tpu_custom_call.1} parent=5 // pred_fallthru
        _
      %p340 = scmp.lt.s32.totalorder %s27, 2
      // Predicated region
      $region45: #{tpu_custom_call.1} parent=5 // pred_check
        %p341 = pneg %p340
      $region46: #{tpu_custom_call.1} parent=5 // pred_check_branch
        %343 = sbr.rel (%p341) target = $region48
      $region47: #{tpu_custom_call.1} parent=5 // pred_region
        // Predicated region
        $region49: #{tpu_custom_call.1} parent=47 // pred_check
          %p344 = pneg %p47
        $region50: #{tpu_custom_call.1} parent=47 // pred_check_branch
          %346 = sbr.rel (%p344) target = $region52
        $region51: #{tpu_custom_call.1} parent=47 // pred_region
          %s347 = sand.u32 %s37, 1
          %s348 = scalar_lea.sflag [#allocation3], %s347
          %s349 = sand.u32 %s37, 1
          %s350 = smul.addr %s349, 8
          %s351 = scalar_lea.vmem [#allocation2], %s350
          %s353 = ssub.s32 128, 128
          %354 = vsyncadd %s348, %s353
          %s355 = smul.addr %s27, 128
          %s356 = scalar_lea.hbm %s0, %s355
          %s358 = sshll.u32 %s351, 4
          %s359 = int_to_ptr.vmem [resolvable:$true] %s358
          %361 = dma.hbm_to_vmem [thread:$0]  %s356, 128, %s359, %s348
        $region52: #{tpu_custom_call.1} parent=47 // pred_fallthru
          _
        // Predicated region
        $region53: #{tpu_custom_call.1} parent=47 // pred_check
          %p362 = pneg %p73
        $region54: #{tpu_custom_call.1} parent=47 // pred_check_branch
          %364 = sbr.rel (%p362) target = $region56
        $region55: #{tpu_custom_call.1} parent=47 // pred_region
          %s365 = sand.u32 %s27, 1
          %s366 = scalar_lea.sflag [#allocation7], %s365
          %s367 = sand.u32 %s63, 1
          %s368 = smul.addr %s367, 64
          %s369 = scalar_lea.vmem [#allocation6], %s368
          %s371 = ssub.s32 1024, 1024
          %372 = vsyncadd %s366, %s371
          %s373 = smul.addr %s27, 8
          %s374 = smul.addr %s373, 128
          %s375 = scalar_lea.hbm %s1, %s374
          %s376 = sshll.u32 %s369, 4
          %s377 = int_to_ptr.vmem [resolvable:$true] %s376
          %382 = dma.hbm_to_vmem [thread:$0]  %s375, 1024, %s377, %s366, 128, 128, 8
        $region56: #{tpu_custom_call.1} parent=47 // pred_fallthru
          _
      $region48: #{tpu_custom_call.1} parent=5 // pred_fallthru
        _
      %p383 = scmp.le.s32.totalorder 1, %s27
      %p384 = scmp.lt.s32.totalorder %s27, 3
      %p385 = pnand %p383, %p384
      %p386 = pneg %p385
      // Predicated region
      $region57: #{tpu_custom_call.1} parent=5 // pred_check
        _
      $region58: #{tpu_custom_call.1} parent=5 // pred_check_branch
        %388 = sbr.rel (%p385) target = $region60
      $region59: #{tpu_custom_call.1} parent=5 // pred_region
        %s389 = ssub.s32 %s27, 1
        %s390 = sand.u32 %s40, 1
        %s391 = scalar_lea.sflag [#allocation3], %s390
        %s392 = sand.u32 %s40, 1
        %s393 = smul.addr %s392, 8
        %s394 = scalar_lea.vmem [#allocation2], %s393
        // Predicated region
        $region61: #{tpu_custom_call.1} parent=59 // pred_check
          %p395 = pneg %p53
        $region62: #{tpu_custom_call.1} parent=59 // pred_check_branch
          %397 = sbr.rel (%p395) target = $region64
        $region63: #{tpu_custom_call.1} parent=59 // pred_region
          %398 = dma.done %s391, 128
        $region64: #{tpu_custom_call.1} parent=59 // pred_fallthru
          _
        %s399 = sand.u32 %s32, 1
        %s400 = scalar_lea.sflag [#allocation7], %s399
        %s401 = sand.u32 %s66, 1
        %s402 = smul.addr %s401, 64
        %s403 = scalar_lea.vmem [#allocation6], %s402
        // Predicated region
        $region65: #{tpu_custom_call.1} parent=59 // pred_check
          %p404 = pneg %p79
        $region66: #{tpu_custom_call.1} parent=59 // pred_check_branch
          %406 = sbr.rel (%p404) target = $region68
        $region67: #{tpu_custom_call.1} parent=59 // pred_region
          %407 = dma.done %s400, 1024
        $region68: #{tpu_custom_call.1} parent=59 // pred_fallthru
          _
        // Predicated region
        $region69: #{tpu_custom_call.1} parent=59 // pred_check
          %p408 = pneg %p100
        $region70: #{tpu_custom_call.1} parent=59 // pred_check_branch
          %410 = sbr.rel (%p408) target = $region72
        $region71: #{tpu_custom_call.1} parent=59 // pred_region
          %411 = dma.done [#allocation7], 320
        $region72: #{tpu_custom_call.1} parent=59 // pred_fallthru
          _
        // Predicated region
        $region73: #{tpu_custom_call.1} parent=59 // pred_check
          %p412 = pneg %p205
        $region74: #{tpu_custom_call.1} parent=59 // pred_check_branch
          %414 = sbr.rel (%p412) target = $region76
        $region75: #{tpu_custom_call.1} parent=59 // pred_region
          %415 = dma.done [#allocation5], 16
        $region76: #{tpu_custom_call.1} parent=59 // pred_fallthru
          _
        // Predicated region
        $region77: #{tpu_custom_call.1} parent=59 // pred_check
          %p416 = pneg %p226
        $region78: #{tpu_custom_call.1} parent=59 // pred_check_branch
          %418 = sbr.rel (%p416) target = $region80
        $region79: #{tpu_custom_call.1} parent=59 // pred_region
          %419 = dma.done [#allocation11], 640
        $region80: #{tpu_custom_call.1} parent=59 // pred_fallthru
          _
        %420 = sfence
        %s421 = sand.u32 %s40, 1
        %s422 = scalar_lea.sflag [#allocation3], %s421
        %s423 = sand.u32 %s40, 1
        %s424 = smul.addr %s423, 8
        %s425 = scalar_lea.vmem [#allocation2], %s424
        %p426 = pneg %p53
        %p427 = pneg %p50
        %s428 = sand.u32 %s32, 1
        %s429 = scalar_lea.sflag [#allocation7], %s428
        %s430 = sand.u32 %s66, 1
        %s431 = smul.addr %s430, 64
        %s432 = scalar_lea.vmem [#allocation6], %s431
        %p433 = pneg %p79
        %p434 = pneg %p76
        %p435 = pneg %p100
        %p436 = pneg %p97
        %p437 = pneg %p121
        %p438 = pneg %p118
        %p439 = pneg %p142
        %p440 = pneg %p139
        %p441 = pneg %p163
        %p442 = pneg %p160
        %p443 = pneg %p184
        %p444 = pneg %p181
        %p445 = pneg %p205
        %p446 = pneg %p202
        %p447 = pneg %p226
        %p448 = pneg %p223
        %p449 = pneg %p247
        %p450 = pneg %p244
        %p451 = pneg %p273
        %p452 = pneg %p270
        %s453 = sand.u32 %s260, 1
        %s454 = scalar_lea.sflag [#allocation4], %s453
        %s455 = sand.u32 %s260, 1
        %s456 = smul.addr %s455, 8
        %s457 = scalar_lea.vmem [#allocation12], %s456
        %v459 = vld [vmem:[%s394] sm:$0xff]
        %v460 = vpack.c.bf16 %v459, %v459
        %v461 = vld [vmem:[#allocation8] sm:$0xf]
        %v462 = vld [vmem:[#allocation8 + $0x4] sm:$0xf]
        %v463 = vld [vmem:[#allocation8 + $0x8] sm:$0xf]
        %v464 = vld [vmem:[#allocation8 + $0xc] sm:$0xf]
        %v465 = vld [vmem:[#allocation8 + $0x10] sm:$0xf]
        %v466 = vld [vmem:[%s3] sm:$0x1]
        %v468 = vlaneseq
        %v469 = vshrl.u32 %v468, 7
        %v470 = vsub.s32 0, %v469
        %v471 = vrot.slane %v466, %v470
        %v478 = vunpack.c.l.b16 %v461
        %v479 = vunpack.c.l.b16 %v462
        %v480 = vunpack.c.l.b16 %v463
        %v481 = vunpack.c.l.b16 %v464
        %v482 = vunpack.c.l.b16 %v465
        %v483 = vpack.c.b16 %v479, %v478
        %v484 = vpack.c.b16 %v481, %v480
        %v485 = vpack.c.b16 %v482, %v482
        %vm488 = vcmask 326656
        %v490 = vsel %vm488, %v460, 0
        %vm492 = vcmask 1043456
        %v494 = vsel %vm492, %v485, 0
        %496 = vmatprep.subr.bf16.mxu0 0
        %497 = vmatpush1.bf16.msra.mxu0 %v483
        %498 = vmatprep.subr.bf16.mxu0 0
        %499 = vmatpush1.bf16.msra.mxu0 %v484
        %500 = vmatprep.subr.bf16.mxu0 0
        %501 = vmatpush1.bf16.msra.mxu0 %v494
        %502 = vmatprep.subr.bf16.mxu0 0
        %503 = vmatpush1.bf16.msra.mxu0 0
        %504 = vmatprep.subr.bf16.mxu0 0
        %505 = vmatpush1.bf16.msra.mxu0 0
        %506 = vmatprep.subr.bf16.mxu0 0
        %507 = vmatpush1.bf16.msra.mxu0 0
        %508 = vmatprep.subr.bf16.mxu0 0
        %509 = vmatpush1.bf16.msra.mxu0 0
        %510 = vmatprep.subr.bf16.mxu0 0
        %511 = vmatpush1.bf16.msra.mxu0 0
        %512 = vmatprep.subr.bf16.mxu0 0
        %513 = vmatpush1.bf16.msra.mxu0 0
        %514 = vmatprep.subr.bf16.mxu0 0
        %515 = vmatpush1.bf16.msra.mxu0 0
        %516 = vmatprep.subr.bf16.mxu0 0
        %517 = vmatpush1.bf16.msra.mxu0 0
        %518 = vmatprep.subr.bf16.mxu0 0
        %519 = vmatpush1.bf16.msra.mxu0 0
        %520 = vmatprep.subr.bf16.mxu0 0
        %521 = vmatpush1.bf16.msra.mxu0 0
        %522 = vmatprep.subr.bf16.mxu0 0
        %523 = vmatpush1.bf16.msra.mxu0 0
        %524 = vmatprep.subr.bf16.mxu0 0
        %525 = vmatpush1.bf16.msra.mxu0 0
        %526 = vmatprep.subr.bf16.mxu0 0
        %527 = vmatpush1.bf16.msra.mxu0 0
        %528 = vmatprep.mubr.bf16.mxu0 0
        %529 = vmatmul.mubr.bf16.gmra.mrb[0].mxu0 %v490
        %v530 = vpop.f32.mrb[0].mxu0
        %v531 = vadd.f32 %v471, %v530
        %v532 = vpop.f32.mrb[0].mxu0
        %v533 = vpop.f32.mrb[0].mxu0
        %v534 = vpop.f32.mrb[0].mxu0
        %535 = vdwg.mxu0
        %v536 = vld [vmem:[%s4] sm:$0x7]
        %v537 = vand.u32 2147483647, %v531
        %vm538 = vcmp.le.f32.partialorder %v537, 0.7853982
        %vm539 = vcmp.lt.s32.totalorder %v531, 0
        %v540 = vand.u32 %v531, 2139095040
        %v541 = vshrl.u32 %v540, 23
        %v542 = vsub.s32 %v541, 127
        %v543 = vand.u32 2147483647, %v531
        %v544 = vand.u32 %v543, 8388607
        %v545 = vor.u32 %v544, 8388608
        %v546 = vsub.s32 0, %v545
        %v547 = vadd.s32 %v542, 1
        %vm548 = vcmp.gt.s32.totalorder %v547, 0
        %v549 = vsel %vm548, %v547, 0
        %v550 = vshrl.u32 %v549, 5
        %v551 = vand.u32 %v549, 31
        %v552 = vsub.s32 32, %v551
        %v553 = vshrl.u32 683565275, %v552
        %v554 = vshll.u32 683565275, %v551
        %v555 = vshrl.u32 2475754826, %v552
        %v556 = vor.u32 %v554, %v555
        %v557 = vshll.u32 2475754826, %v551
        %v558 = vshrl.u32 2131351028, %v552
        %v559 = vor.u32 %v557, %v558
        %v560 = vshll.u32 2131351028, %v551
        %v561 = vshrl.u32 2102212464, %v552
        %v562 = vor.u32 %v560, %v561
        %v563 = vshll.u32 2102212464, %v551
        %v564 = vshrl.u32 920167782, %v552
        %v565 = vor.u32 %v563, %v564
        %v566 = vshll.u32 920167782, %v551
        %v567 = vshrl.u32 1326507024, %v552
        %v568 = vor.u32 %v566, %v567
        %vm569 = vcmp.lt.s32.totalorder %v550, 1
        %vm570 = vcmp.lt.s32.totalorder %v550, 2
        %vm571 = vcmp.lt.s32.totalorder %v550, 3
        %vm572 = vcmp.lt.s32.totalorder %v550, 4
        %v573 = vsel %vm569, %v553, %v556
        %v574 = vsel %vm572, %v562, 2102212464
        %v575 = vsel %vm571, %v559, %v574
        %v576 = vsel %vm570, %v573, %v575
        %v577 = vsel %vm569, %v556, %v559
        %v578 = vsel %vm572, %v565, 920167782
        %v579 = vsel %vm571, %v562, %v578
        %v580 = vsel %vm570, %v577, %v579
        %v581 = vsel %vm569, %v559, %v562
        %v582 = vsel %vm572, %v568, 1326507024
        %v583 = vsel %vm571, %v565, %v582
        %v584 = vsel %vm570, %v581, %v583
        %v585 = vshll.u32 %v545, 8
        %v586 = vmul.u32.u64.compose %v585, %v584
        %v587 = vextract.low.u32 %v586
        %v588 = vextract.high.u32 %v586
        %v589 = vmul.u32.u64.compose %v585, %v580
        %v590 = vextract.low.u32 %v589
        %v591 = vextract.high.u32 %v589
        %v592 = vmul.u32 %v585, %v576
        %v593 = vadd.s32 %v588, %v590
        %vm594 = vc.u32 %v588, %v590
        %v595 = vadd.s32 %v591, 1
        %v596 = vsel %vm594, %v595, %v591
        %v597 = vadd.s32 %v592, %v596
        %v598 = vadd.s32 %v597, 536870912
        %v599 = vshrl.u32 %v598, 30
        %v600 = vshll.u32 %v599, 30
        %v601 = vsub.s32 %v597, %v600
        %vm602 = vcmp.lt.s32.totalorder %v601, 0
        %v603 = vsub.s32 0, %v601
        %v604 = vsel %vm602, %v603, %v601
        %v605 = vclz %v604
        %v606 = vsub.s32 %v605, 2
        %vm607 = vcmp.gt.s32.totalorder 0, %v606
        %v608 = vsel %vm607, 0, %v606
        %v609 = vsub.s32 32, %v608
        %v610 = vshll.u32 %v601, %v608
        %v611 = vshrl.u32 %v593, %v609
        %v612 = vor.u32 %v610, %v611
        %v613 = vsub.s32 4294967266, %v608
        %v614 = vadd.s32 %v613, 127
        %v615 = vshll.u32 %v614, 23
        %v616 = vor.u32 4788187, %v615
        %v617 = vand.u32 2147483647, %v616
        %v619 = vcvt.s32.f32 %v612
        %v620 = vmul.f32 %v619, %v617
        %v621 = vxor.u32 %v620, 2147483648
        %v622 = vsel %vm539, %v621, %v620
        %v623 = vsub.s32 4, %v599
        %v624 = vsel %vm539, %v623, %v599
        %v625 = vsel %vm538, %v531, %v622
        %v626 = vsel %vm538, 0, %v624
        %v627 = vcosq.f32.pop %v625
        %v628 = vsinq.f32.pop %v625
        %vm629 = vweird.f32 %v531
        %v630 = vand.u32 %v626, 3
        %vm631 = vcmp.lt.s32.totalorder %v630, 2
        %vm632 = vcmp.eq.s32.totalorder %v630, 0
        %v633 = vxor.u32 %v628, 2147483648
        %v634 = vsel %vm632, %v627, %v633
        %vm635 = vcmp.eq.s32.totalorder %v630, 2
        %v636 = vxor.u32 %v627, 2147483648
        %v637 = vsel %vm635, %v636, %v628
        %v638 = vsel %vm631, %v634, %v637
        %v639 = vsel %vm629, nan, %v638
        %v640 = vlaneseq
        %v641 = vshrl.u32 %v640, 7
        %v642 = vsub.s32 0, %v641
        %v643 = vrot.slane %v536, %v642
        %v644 = vmul.f32 %v643, %v639
        %v645 = vand.u32 2147483647, %v531
        %vm646 = vcmp.le.f32.partialorder %v645, 0.7853982
        %vm647 = vcmp.lt.s32.totalorder %v531, 0
        %v648 = vand.u32 %v531, 2139095040
        %v649 = vshrl.u32 %v648, 23
        %v650 = vsub.s32 %v649, 127
        %v651 = vand.u32 2147483647, %v531
        %v652 = vand.u32 %v651, 8388607
        %v653 = vor.u32 %v652, 8388608
        %v654 = vsub.s32 0, %v653
        %v655 = vadd.s32 %v650, 1
        %vm656 = vcmp.gt.s32.totalorder %v655, 0
        %v657 = vsel %vm656, %v655, 0
        %v658 = vshrl.u32 %v657, 5
        %v659 = vand.u32 %v657, 31
        %v660 = vsub.s32 32, %v659
        %v661 = vshrl.u32 683565275, %v660
        %v662 = vshll.u32 683565275, %v659
        %v663 = vshrl.u32 2475754826, %v660
        %v664 = vor.u32 %v662, %v663
        %v665 = vshll.u32 2475754826, %v659
        %v666 = vshrl.u32 2131351028, %v660
        %v667 = vor.u32 %v665, %v666
        %v668 = vshll.u32 2131351028, %v659
        %v669 = vshrl.u32 2102212464, %v660
        %v670 = vor.u32 %v668, %v669
        %v671 = vshll.u32 2102212464, %v659
        %v672 = vshrl.u32 920167782, %v660
        %v673 = vor.u32 %v671, %v672
        %v674 = vshll.u32 920167782, %v659
        %v675 = vshrl.u32 1326507024, %v660
        %v676 = vor.u32 %v674, %v675
        %vm677 = vcmp.lt.s32.totalorder %v658, 1
        %vm678 = vcmp.lt.s32.totalorder %v658, 2
        %vm679 = vcmp.lt.s32.totalorder %v658, 3
        %vm680 = vcmp.lt.s32.totalorder %v658, 4
        %v681 = vsel %vm677, %v661, %v664
        %v682 = vsel %vm680, %v670, 2102212464
        %v683 = vsel %vm679, %v667, %v682
        %v684 = vsel %vm678, %v681, %v683
        %v685 = vsel %vm677, %v664, %v667
        %v686 = vsel %vm680, %v673, 920167782
        %v687 = vsel %vm679, %v670, %v686
        %v688 = vsel %vm678, %v685, %v687
        %v689 = vsel %vm677, %v667, %v670
        %v690 = vsel %vm680, %v676, 1326507024
        %v691 = vsel %vm679, %v673, %v690
        %v692 = vsel %vm678, %v689, %v691
        %v693 = vshll.u32 %v653, 8
        %v694 = vmul.u32.u64.compose %v693, %v692
        %v695 = vextract.low.u32 %v694
        %v696 = vextract.high.u32 %v694
        %v697 = vmul.u32.u64.compose %v693, %v688
        %v698 = vextract.low.u32 %v697
        %v699 = vextract.high.u32 %v697
        %v700 = vmul.u32 %v693, %v684
        %v701 = vadd.s32 %v696, %v698
        %vm702 = vc.u32 %v696, %v698
        %v703 = vadd.s32 %v699, 1
        %v704 = vsel %vm702, %v703, %v699
        %v705 = vadd.s32 %v700, %v704
        %v706 = vadd.s32 %v705, 536870912
        %v707 = vshrl.u32 %v706, 30
        %v708 = vshll.u32 %v707, 30
        %v709 = vsub.s32 %v705, %v708
        %vm710 = vcmp.lt.s32.totalorder %v709, 0
        %v711 = vsub.s32 0, %v709
        %v712 = vsel %vm710, %v711, %v709
        %v713 = vclz %v712
        %v714 = vsub.s32 %v713, 2
        %vm715 = vcmp.gt.s32.totalorder 0, %v714
        %v716 = vsel %vm715, 0, %v714
        %v717 = vsub.s32 32, %v716
        %v718 = vshll.u32 %v709, %v716
        %v719 = vshrl.u32 %v701, %v717
        %v720 = vor.u32 %v718, %v719
        %v721 = vsub.s32 4294967266, %v716
        %v722 = vadd.s32 %v721, 127
        %v723 = vshll.u32 %v722, 23
        %v724 = vor.u32 4788187, %v723
        %v725 = vand.u32 2147483647, %v724
        %v727 = vcvt.s32.f32 %v720
        %v728 = vmul.f32 %v727, %v725
        %v729 = vxor.u32 %v728, 2147483648
        %v730 = vsel %vm647, %v729, %v728
        %v731 = vsub.s32 4, %v707
        %v732 = vsel %vm647, %v731, %v707
        %v733 = vsel %vm646, %v531, %v730
        %v734 = vsel %vm646, 0, %v732
        %v735 = vcosq.f32.pop %v733
        %v736 = vsinq.f32.pop %v733
        %vm737 = vweird.f32 %v531
        %v738 = vadd.s32 %v734, 3
        %v739 = vand.u32 %v738, 3
        %vm740 = vcmp.lt.s32.totalorder %v739, 2
        %vm741 = vcmp.eq.s32.totalorder %v739, 0
        %v742 = vxor.u32 %v736, 2147483648
        %v743 = vsel %vm741, %v735, %v742
        %vm744 = vcmp.eq.s32.totalorder %v739, 2
        %v745 = vxor.u32 %v735, 2147483648
        %v746 = vsel %vm744, %v745, %v736
        %v747 = vsel %vm740, %v743, %v746
        %v748 = vsel %vm737, nan, %v747
        %v749 = vlaneseq
        %v750 = vshrl.u32 %v749, 7
        %v751 = vsub.s32 1, %v750
        %v752 = vrot.slane %v536, %v751
        %v753 = vmul.f32 %v752, %v748
        %v754 = vadd.f32 %v644, %v753
        %v755 = vlaneseq
        %v756 = vshrl.u32 %v755, 7
        %v757 = vsub.s32 2, %v756
        %v758 = vrot.slane %v536, %v757
        %v759 = vmul.f32 %v758, %v531
        %v760 = vadd.f32 %v754, %v759
        %v761 = vld [vmem:[%s6] sm:$0x3]
        %v762 = vlaneseq
        %v763 = vshrl.u32 %v762, 7
        %v764 = vsub.s32 0, %v763
        %v765 = vrot.slane %v761, %v764
        %v766 = vmul.f32 %v760, %v765
        %v767 = vsel %vm488, %v766, 0.0
        %768 = vadd.xlane.f32.xlu0 %v767
        %v769 = vpop.xlane.xlu0 %768
        %s770 = sld [smem:[#allocation9]]
        %v771 = vstv %s770
        %v772 = vadd.f32 %v769, %v771
        %v773 = vxor.u32 %v772, 2147483648
        %v774 = vmul.f32 %v773, 1.442695
        %v775 = vpow.pop %v774
        %v776 = vadd.f32 %v775, 1.0
        %v777 = vrcp.pop %v776
        %v778 = vmul.f32 1.0, %v777
        %v779 = vlaneseq
        %v780 = vshrl.u32 %v779, 7
        %v781 = vsub.s32 1, %v780
        %v782 = vrot.slane %v761, %v781
        %v783 = vmul.f32 %v760, %v782
        %v784 = vsel %vm488, %v783, 0.0
        %785 = vadd.xlane.f32.xlu0 %v784
        %v786 = vpop.xlane.xlu0 %785
        %s787 = sld [smem:[#allocation9 + $0x1]]
        %v788 = vstv %s787
        %v789 = vadd.f32 %v786, %v788
        %v790 = vxor.u32 %v789, 2147483648
        %v791 = vmul.f32 %v790, 1.442695
        %v792 = vpow.pop %v791
        %v793 = vadd.f32 %v792, 1.0
        %v794 = vrcp.pop %v793
        %v795 = vmul.f32 1.0, %v794
        %v796 = vld [vmem:[%s5] sm:$0xff]
        %v797 = vpack.c.bf16 %v760, %v760
        %v799 = vcombine.high %v796, %v796
        %v801 = vunpack.c.l.s4 1966171168
        %v802 = vunpack.c.0.s8 %v801
        %v803 = vlaneseq
        %v804 = vshrl.u32 %v803, 7
        %v805 = vsub.s32 %v802, %v804
        %v806 = vrot.slane %v796, %v805
        %v808 = vunpack.c.l.s4 1966171168
        %v809 = vunpack.c.0.s8 %v808
        %v810 = vlaneseq
        %v811 = vshrl.u32 %v810, 7
        %v812 = vsub.s32 %v809, %v811
        %v813 = vrot.slane %v799, %v812
        %v814 = vcombine.high %v806, %v806
        %v815 = vcombine.high %v813, %v813
        %v817 = vunpack.c.l.s4 1966171168
        %v818 = vunpack.c.0.s8 %v817
        %v819 = vlaneseq
        %v820 = vshrl.u32 %v819, 7
        %v821 = vsub.s32 %v818, %v820
        %v822 = vrot.slane %v806, %v821
        %v824 = vunpack.c.l.s4 1966171168
        %v825 = vunpack.c.0.s8 %v824
        %v826 = vlaneseq
        %v827 = vshrl.u32 %v826, 7
        %v828 = vsub.s32 %v825, %v827
        %v829 = vrot.slane %v813, %v828
        %v831 = vunpack.c.l.s4 1966171168
        %v832 = vunpack.c.0.s8 %v831
        %v833 = vlaneseq
        %v834 = vshrl.u32 %v833, 7
        %v835 = vsub.s32 %v832, %v834
        %v836 = vrot.slane %v814, %v835
        %v838 = vunpack.c.l.s4 1966171168
        %v839 = vunpack.c.0.s8 %v838
        %v840 = vlaneseq
        %v841 = vshrl.u32 %v840, 7
        %v842 = vsub.s32 %v839, %v841
        %v843 = vrot.slane %v815, %v842
        %v844 = vcombine.high %v822, %v822
        %v845 = vcombine.high %v829, %v829
        %v846 = vcombine.high %v836, %v836
        %v847 = vcombine.high %v843, %v843
        %v848 = vlaneseq
        %v849 = vshrl.u32 %v848, 7
        %v850 = vsub.s32 0, %v849
        %v851 = vrot.slane %v822, %v850
        %v852 = vlaneseq
        %v853 = vshrl.u32 %v852, 7
        %v854 = vsub.s32 0, %v853
        %v855 = vrot.slane %v836, %v854
        %v856 = vlaneseq
        %v857 = vshrl.u32 %v856, 7
        %v858 = vsub.s32 0, %v857
        %v859 = vrot.slane %v844, %v858
        %v860 = vlaneseq
        %v861 = vshrl.u32 %v860, 7
        %v862 = vsub.s32 0, %v861
        %v863 = vrot.slane %v846, %v862
        %v864 = vlaneseq
        %v865 = vshrl.u32 %v864, 7
        %v866 = vsub.s32 0, %v865
        %v867 = vrot.slane %v829, %v866
        %v868 = vlaneseq
        %v869 = vshrl.u32 %v868, 7
        %v870 = vsub.s32 0, %v869
        %v871 = vrot.slane %v843, %v870
        %v872 = vlaneseq
        %v873 = vshrl.u32 %v872, 7
        %v874 = vsub.s32 0, %v873
        %v875 = vrot.slane %v845, %v874
        %v876 = vlaneseq
        %v877 = vshrl.u32 %v876, 7
        %v878 = vsub.s32 0, %v877
        %v879 = vrot.slane %v847, %v878
        %v888 = vmul.f32 %v760, %v851
        %v889 = vmul.f32 %v760, %v855
        %v890 = vmul.f32 %v760, %v859
        %v891 = vmul.f32 %v760, %v863
        %v892 = vmul.f32 %v760, %v867
        %v893 = vmul.f32 %v760, %v871
        %v894 = vmul.f32 %v760, %v875
        %v895 = vmul.f32 %v760, %v879
        %v896 = vpack.c.bf16 %v889, %v888
        %v897 = vpack.c.bf16 %v891, %v890
        %v898 = vpack.c.bf16 %v893, %v892
        %v899 = vpack.c.bf16 %v895, %v894
        %901 = vrot.lane.b32.xlu0 %v797, 88
        %v902 = vpop.permute.xlu0 %901
        %v904 = vsel %vm488, %v896, 0
        %v907 = vsel %vm488, %v897, 0
        %v910 = vsel %vm488, %v898, 0
        %v913 = vsel %vm488, %v899, 0
        %v916 = vsel %vm488, %v902, 0
        %918 = vmatprep.subr.bf16.mxu0 0
        %919 = vmatpush1.bf16.xpose.msra.mxu0 %v916
        %920 = vmatprep.subr.bf16.mxu0 0
        %921 = vmatpush1.bf16.xpose.msra.mxu0 0
        %922 = vmatprep.subr.bf16.mxu0 0
        %923 = vmatpush1.bf16.xpose.msra.mxu0 0
        %924 = vmatprep.subr.bf16.mxu0 0
        %925 = vmatpush1.bf16.xpose.msra.mxu0 0
        %926 = vmatprep.subr.bf16.mxu0 0
        %927 = vmatpush1.bf16.xpose.msra.mxu0 0
        %928 = vmatprep.subr.bf16.mxu0 0
        %929 = vmatpush1.bf16.xpose.msra.mxu0 0
        %930 = vmatprep.subr.bf16.mxu0 0
        %931 = vmatpush1.bf16.xpose.msra.mxu0 0
        %932 = vmatprep.subr.bf16.mxu0 0
        %933 = vmatpush1.bf16.xpose.msra.mxu0 0
        %934 = vmatprep.subr.bf16.mxu0 0
        %935 = vmatpush1.bf16.xpose.msra.mxu0 0
        %936 = vmatprep.subr.bf16.mxu0 0
        %937 = vmatpush1.bf16.xpose.msra.mxu0 0
        %938 = vmatprep.subr.bf16.mxu0 0
        %939 = vmatpush1.bf16.xpose.msra.mxu0 0
        %940 = vmatprep.subr.bf16.mxu0 0
        %941 = vmatpush1.bf16.xpose.msra.mxu0 0
        %942 = vmatprep.subr.bf16.mxu0 0
        %943 = vmatpush1.bf16.xpose.msra.mxu0 0
        %944 = vmatprep.subr.bf16.mxu0 0
        %945 = vmatpush1.bf16.xpose.msra.mxu0 0
        %946 = vmatprep.subr.bf16.mxu0 0
        %947 = vmatpush1.bf16.xpose.msra.mxu0 0
        %948 = vmatprep.subr.bf16.mxu0 0
        %949 = vmatpush1.bf16.xpose.msra.mxu0 0
        %950 = vmatprep.mubr.bf16.mxu0 0
        %951 = vmatmul.mubr.bf16.gmra.mrb[0].mxu0 %v904
        %v952 = vpop.f32.mrb[0].mxu0
        %v953 = vadd.f32 0.0, %v952
        %v954 = vpop.f32.mrb[0].mxu0
        %v955 = vpop.f32.mrb[0].mxu0
        %v956 = vadd.f32 0.0, %v955
        %v957 = vpop.f32.mrb[0].mxu0
        %958 = vmatprep.mubr.bf16.mxu0 0
        %959 = vmatmul.mubr.bf16.gmra.mrb[0].mxu0 %v907
        %v960 = vpop.f32.mrb[0].mxu0
        %v961 = vadd.f32 0.0, %v960
        %v962 = vpop.f32.mrb[0].mxu0
        %v963 = vpop.f32.mrb[0].mxu0
        %v964 = vadd.f32 0.0, %v963
        %v965 = vpop.f32.mrb[0].mxu0
        %966 = vmatprep.mubr.bf16.mxu0 0
        %967 = vmatmul.mubr.bf16.gmra.mrb[0].mxu0 %v910
        %v968 = vpop.f32.mrb[0].mxu0
        %v969 = vadd.f32 0.0, %v968
        %v970 = vpop.f32.mrb[0].mxu0
        %v971 = vpop.f32.mrb[0].mxu0
        %v972 = vadd.f32 0.0, %v971
        %v973 = vpop.f32.mrb[0].mxu0
        %974 = vmatprep.mubr.bf16.mxu0 0
        %975 = vmatmul.mubr.bf16.gmra.mrb[0].mxu0 %v913
        %v976 = vpop.f32.mrb[0].mxu0
        %v977 = vadd.f32 0.0, %v976
        %v978 = vpop.f32.mrb[0].mxu0
        %v979 = vpop.f32.mrb[0].mxu0
        %v980 = vadd.f32 0.0, %v979
        %v981 = vpop.f32.mrb[0].mxu0
        %982 = vdwg.mxu0
        %v983 = vsel 1, %v778, %v795
        %v984 = vsel 0, %v778, %v795
        %v985 = vld [vmem:[%s403] sm:$0xff]
        %v986 = vld [vmem:[%s403 + $0x8] sm:$0xff]
        %v987 = vld [vmem:[%s403 + $0x10] sm:$0xff]
        %v988 = vld [vmem:[%s403 + $0x18] sm:$0xff]
        %v989 = vld [vmem:[%s403 + $0x20] sm:$0xff]
        %v990 = vld [vmem:[%s403 + $0x28] sm:$0xff]
        %v991 = vld [vmem:[%s403 + $0x30] sm:$0xff]
        %v992 = vld [vmem:[%s403 + $0x38] sm:$0xff]
        %v993 = vmul.f32 %v983, %v985
        %v994 = vmul.f32 %v983, %v986
        %v995 = vmul.f32 %v983, %v987
        %v996 = vmul.f32 %v983, %v988
        %v997 = vmul.f32 %v984, %v989
        %v998 = vmul.f32 %v984, %v990
        %v999 = vmul.f32 %v984, %v991
        %v1000 = vmul.f32 %v984, %v992
        %v1001 = vadd.f32 %v953, %v993
        %v1002 = vadd.f32 %v956, %v994
        %v1003 = vadd.f32 %v961, %v995
        %v1004 = vadd.f32 %v964, %v996
        %v1005 = vadd.f32 %v969, %v997
        %v1006 = vadd.f32 %v972, %v998
        %v1007 = vadd.f32 %v977, %v999
        %v1008 = vadd.f32 %v980, %v1000
        %v1009 = vmul.f32 %v1001, 0.15811388
        %v1010 = vmul.f32 %v1002, 0.15811388
        %v1011 = vmul.f32 %v1003, 0.15811388
        %v1012 = vmul.f32 %v1004, 0.15811388
        %v1013 = vmul.f32 %v1005, 0.15811388
        %v1014 = vmul.f32 %v1006, 0.15811388
        %v1015 = vmul.f32 %v1007, 0.15811388
        %v1016 = vmul.f32 %v1008, 0.15811388
        %vm1017 = vcmask 64512
        %v1018 = vsel %vm1017, %v1009, -inf
        %1019 = vmax.xlane.f32.xlu0 %v1018
        %v1020 = vpop.xlane.xlu0 %1019
        %v1021 = vsel %vm1017, %v1010, -inf
        %1022 = vmax.xlane.f32.xlu0 %v1021
        %v1023 = vpop.xlane.xlu0 %1022
        %v1024 = vsel %vm1017, %v1011, -inf
        %1025 = vmax.xlane.f32.xlu0 %v1024
        %v1026 = vpop.xlane.xlu0 %1025
        %v1027 = vsel %vm1017, %v1012, -inf
        %1028 = vmax.xlane.f32.xlu0 %v1027
        %v1029 = vpop.xlane.xlu0 %1028
        %v1030 = vsel %vm1017, %v1013, -inf
        %1031 = vmax.xlane.f32.xlu0 %v1030
        %v1032 = vpop.xlane.xlu0 %1031
        %v1033 = vsel %vm1017, %v1014, -inf
        %1034 = vmax.xlane.f32.xlu0 %v1033
        %v1035 = vpop.xlane.xlu0 %1034
        %v1036 = vsel %vm1017, %v1015, -inf
        %1037 = vmax.xlane.f32.xlu0 %v1036
        %v1038 = vpop.xlane.xlu0 %1037
        %v1039 = vsel %vm1017, %v1016, -inf
        %1040 = vmax.xlane.f32.xlu0 %v1039
        %v1041 = vpop.xlane.xlu0 %1040
        %v1042 = vsub.f32 %v1009, %v1020
        %v1043 = vsub.f32 %v1010, %v1023
        %v1044 = vsub.f32 %v1011, %v1026
        %v1045 = vsub.f32 %v1012, %v1029
        %v1046 = vsub.f32 %v1013, %v1032
        %v1047 = vsub.f32 %v1014, %v1035
        %v1048 = vsub.f32 %v1015, %v1038
        %v1049 = vsub.f32 %v1016, %v1041
        %v1050 = vmul.f32 %v1042, 1.442695
        %v1051 = vpow.pop %v1050
        %v1052 = vmul.f32 %v1043, 1.442695
        %v1053 = vpow.pop %v1052
        %v1054 = vmul.f32 %v1044, 1.442695
        %v1055 = vpow.pop %v1054
        %v1056 = vmul.f32 %v1045, 1.442695
        %v1057 = vpow.pop %v1056
        %v1058 = vmul.f32 %v1046, 1.442695
        %v1059 = vpow.pop %v1058
        %v1060 = vmul.f32 %v1047, 1.442695
        %v1061 = vpow.pop %v1060
        %v1062 = vmul.f32 %v1048, 1.442695
        %v1063 = vpow.pop %v1062
        %v1064 = vmul.f32 %v1049, 1.442695
        %v1065 = vpow.pop %v1064
        %v1066 = vsel %vm1017, %v1051, 0.0
        %1067 = vadd.xlane.f32.xlu0 %v1066
        %v1068 = vpop.xlane.xlu0 %1067
        %v1069 = vsel %vm1017, %v1053, 0.0
        %1070 = vadd.xlane.f32.xlu0 %v1069
        %v1071 = vpop.xlane.xlu0 %1070
        %v1072 = vsel %vm1017, %v1055, 0.0
        %1073 = vadd.xlane.f32.xlu0 %v1072
        %v1074 = vpop.xlane.xlu0 %1073
        %v1075 = vsel %vm1017, %v1057, 0.0
        %1076 = vadd.xlane.f32.xlu0 %v1075
        %v1077 = vpop.xlane.xlu0 %1076
        %v1078 = vsel %vm1017, %v1059, 0.0
        %1079 = vadd.xlane.f32.xlu0 %v1078
        %v1080 = vpop.xlane.xlu0 %1079
        %v1081 = vsel %vm1017, %v1061, 0.0
        %1082 = vadd.xlane.f32.xlu0 %v1081
        %v1083 = vpop.xlane.xlu0 %1082
        %v1084 = vsel %vm1017, %v1063, 0.0
        %1085 = vadd.xlane.f32.xlu0 %v1084
        %v1086 = vpop.xlane.xlu0 %1085
        %v1087 = vsel %vm1017, %v1065, 0.0
        %1088 = vadd.xlane.f32.xlu0 %v1087
        %v1089 = vpop.xlane.xlu0 %1088
        %v1090 = vrcp.pop %v1068
        %v1091 = vrcp.pop %v1071
        %v1092 = vrcp.pop %v1074
        %v1093 = vrcp.pop %v1077
        %v1094 = vrcp.pop %v1080
        %v1095 = vrcp.pop %v1083
        %v1096 = vrcp.pop %v1086
        %v1097 = vrcp.pop %v1089
        %v1098 = vmul.f32 %v1051, %v1090
        %v1099 = vmul.f32 %v1053, %v1091
        %v1100 = vmul.f32 %v1055, %v1092
        %v1101 = vmul.f32 %v1057, %v1093
        %v1102 = vmul.f32 %v1059, %v1094
        %v1103 = vmul.f32 %v1061, %v1095
        %v1104 = vmul.f32 %v1063, %v1096
        %v1105 = vmul.f32 %v1065, %v1097
        %v1106 = vpack.c.bf16 %v1099, %v1098
        %v1107 = vpack.c.bf16 %v1101, %v1100
        %v1108 = vpack.c.bf16 %v1103, %v1102
        %v1109 = vpack.c.bf16 %v1105, %v1104
        %1110 = vrot.lane.b32.xlu0 %v797, 48
        %v1111 = vpop.permute.xlu0 %1110
        %v1113 = vsel %vm1017, %v1106, 0
        %v1116 = vsel %vm1017, %v1107, 0
        %v1119 = vsel %vm1017, %v1108, 0
        %v1122 = vsel %vm1017, %v1109, 0
        %v1125 = vsel %vm492, %v1111, 0
        %1127 = vmatprep.subr.bf16.mxu0 0
        %1128 = vmatpush1.bf16.msra.mxu0 %v1125
        %1129 = vmatprep.subr.bf16.mxu0 0
        %1130 = vmatpush1.bf16.msra.mxu0 0
        %1131 = vmatprep.subr.bf16.mxu0 0
        %1132 = vmatpush1.bf16.msra.mxu0 0
        %1133 = vmatprep.subr.bf16.mxu0 0
        %1134 = vmatpush1.bf16.msra.mxu0 0
        %1135 = vmatprep.subr.bf16.mxu0 0
        %1136 = vmatpush1.bf16.msra.mxu0 0
        %1137 = vmatprep.subr.bf16.mxu0 0
        %1138 = vmatpush1.bf16.msra.mxu0 0
        %1139 = vmatprep.subr.bf16.mxu0 0
        %1140 = vmatpush1.bf16.msra.mxu0 0
        %1141 = vmatprep.subr.bf16.mxu0 0
        %1142 = vmatpush1.bf16.msra.mxu0 0
        %1143 = vmatprep.subr.bf16.mxu0 0
        %1144 = vmatpush1.bf16.msra.mxu0 0
        %1145 = vmatprep.subr.bf16.mxu0 0
        %1146 = vmatpush1.bf16.msra.mxu0 0
        %1147 = vmatprep.subr.bf16.mxu0 0
        %1148 = vmatpush1.bf16.msra.mxu0 0
        %1149 = vmatprep.subr.bf16.mxu0 0
        %1150 = vmatpush1.bf16.msra.mxu0 0
        %1151 = vmatprep.subr.bf16.mxu0 0
        %1152 = vmatpush1.bf16.msra.mxu0 0
        %1153 = vmatprep.subr.bf16.mxu0 0
        %1154 = vmatpush1.bf16.msra.mxu0 0
        %1155 = vmatprep.subr.bf16.mxu0 0
        %1156 = vmatpush1.bf16.msra.mxu0 0
        %1157 = vmatprep.subr.bf16.mxu0 0
        %1158 = vmatpush1.bf16.msra.mxu0 0
        %1159 = vmatprep.mubr.bf16.mxu0 0
        %1160 = vmatmul.mubr.bf16.gmra.mrb[0].mxu0 %v1113
        %v1161 = vpop.f32.mrb[0].mxu0
        %v1162 = vadd.f32 0.0, %v1161
        %v1163 = vpop.f32.mrb[0].mxu0
        %v1164 = vpop.f32.mrb[0].mxu0
        %v1165 = vadd.f32 0.0, %v1164
        %v1166 = vpop.f32.mrb[0].mxu0
        %1167 = vmatprep.mubr.bf16.mxu0 0
        %1168 = vmatmul.mubr.bf16.gmra.mrb[0].mxu0 %v1116
        %v1169 = vpop.f32.mrb[0].mxu0
        %v1170 = vadd.f32 0.0, %v1169
        %v1171 = vpop.f32.mrb[0].mxu0
        %v1172 = vpop.f32.mrb[0].mxu0
        %v1173 = vadd.f32 0.0, %v1172
        %v1174 = vpop.f32.mrb[0].mxu0
        %1175 = vmatprep.mubr.bf16.mxu0 0
        %1176 = vmatmul.mubr.bf16.gmra.mrb[0].mxu0 %v1119
        %v1177 = vpop.f32.mrb[0].mxu0
        %v1178 = vadd.f32 0.0, %v1177
        %v1179 = vpop.f32.mrb[0].mxu0
        %v1180 = vpop.f32.mrb[0].mxu0
        %v1181 = vadd.f32 0.0, %v1180
        %v1182 = vpop.f32.mrb[0].mxu0
        %1183 = vmatprep.mubr.bf16.mxu0 0
        %1184 = vmatmul.mubr.bf16.gmra.mrb[0].mxu0 %v1122
        %v1185 = vpop.f32.mrb[0].mxu0
        %v1186 = vadd.f32 0.0, %v1185
        %v1187 = vpop.f32.mrb[0].mxu0
        %v1188 = vpop.f32.mrb[0].mxu0
        %v1189 = vadd.f32 0.0, %v1188
        %v1190 = vpop.f32.mrb[0].mxu0
        %1191 = vdwg.mxu0
        %v1192 = vmul.f32 %v1162, %v851
        %v1193 = vmul.f32 %v1165, %v855
        %v1194 = vmul.f32 %v1170, %v859
        %v1195 = vmul.f32 %v1173, %v863
        %v1196 = vmul.f32 %v1178, %v867
        %v1197 = vmul.f32 %v1181, %v871
        %v1198 = vmul.f32 %v1186, %v875
        %v1199 = vmul.f32 %v1189, %v879
        %v1200 = vsel %vm488, %v1192, 0.0
        %v1201 = vsel %vm488, %v1193, 0.0
        %v1202 = vadd.f32 %v1200, %v1201
        %v1203 = vsel %vm488, %v1194, 0.0
        %v1204 = vadd.f32 %v1202, %v1203
        %v1205 = vsel %vm488, %v1195, 0.0
        %v1206 = vadd.f32 %v1204, %v1205
        %v1207 = vsel %vm488, %v1196, 0.0
        %v1208 = vadd.f32 %v1206, %v1207
        %v1209 = vsel %vm488, %v1197, 0.0
        %v1210 = vadd.f32 %v1208, %v1209
        %v1211 = vsel %vm488, %v1198, 0.0
        %v1212 = vadd.f32 %v1210, %v1211
        %v1213 = vsel %vm488, %v1199, 0.0
        %v1214 = vadd.f32 %v1212, %v1213
        %v1215 = vld [vmem:[#allocation10] sm:$0xff]
        %v1216 = vld [vmem:[#allocation10 + $0x8] sm:$0xff]
        %v1217 = vld [vmem:[#allocation10 + $0x10] sm:$0xff]
        %v1218 = vld [vmem:[#allocation10 + $0x18] sm:$0xff]
        %v1219 = vld [vmem:[#allocation10 + $0x20] sm:$0xff]
        %v1220 = vld [vmem:[%s9] sm:$0x1]
        %v1222 = vlaneseq
        %v1223 = vshrl.u32 %v1222, 7
        %v1224 = vsub.s32 0, %v1223
        %v1225 = vrot.slane %v1220, %v1224
        %v1228 = vsel %vm488, %v1214, 0
        %1230 = vmatprep.subr.mxu0 0.0
        %1231 = vmatpush1.msra.mxu0 %v1215
        %1232 = vmatprep.subr.mxu0 0.0
        %1233 = vmatpush1.msra.mxu0 %v1216
        %1234 = vmatprep.subr.mxu0 0.0
        %1235 = vmatpush1.msra.mxu0 %v1217
        %1236 = vmatprep.subr.mxu0 0.0
        %1237 = vmatpush1.msra.mxu0 %v1218
        %1238 = vmatprep.subr.mxu0 0.0
        %1239 = vmatpush1.msra.mxu0 %v1219
        %1240 = vmatprep.subr.mxu0 0.0
        %1241 = vmatpush1.msra.mxu0 0.0
        %1242 = vmatprep.subr.mxu0 0.0
        %1243 = vmatpush1.msra.mxu0 0.0
        %1244 = vmatprep.subr.mxu0 0.0
        %1245 = vmatpush1.msra.mxu0 0.0
        %1246 = vmatprep.subr.mxu0 0.0
        %1247 = vmatpush1.msra.mxu0 0.0
        %1248 = vmatprep.subr.mxu0 0.0
        %1249 = vmatpush1.msra.mxu0 0.0
        %1250 = vmatprep.subr.mxu0 0.0
        %1251 = vmatpush1.msra.mxu0 0.0
        %1252 = vmatprep.subr.mxu0 0.0
        %1253 = vmatpush1.msra.mxu0 0.0
        %1254 = vmatprep.subr.mxu0 0.0
        %1255 = vmatpush1.msra.mxu0 0.0
        %1256 = vmatprep.subr.mxu0 0.0
        %1257 = vmatpush1.msra.mxu0 0.0
        %1258 = vmatprep.subr.mxu0 0.0
        %1259 = vmatpush1.msra.mxu0 0.0
        %1260 = vmatprep.subr.mxu0 0.0
        %1261 = vmatpush1.msra.mxu0 0.0
        %1262 = vmatprep.subr.mxu0 0.0
        %1263 = vmatpush1.msra.mxu0 0.0
        %1264 = vmatprep.subr.mxu0 0.0
        %1265 = vmatpush1.msra.mxu0 0.0
        %1266 = vmatprep.subr.mxu0 0.0
        %1267 = vmatpush1.msra.mxu0 0.0
        %1268 = vmatprep.subr.mxu0 0.0
        %1269 = vmatpush1.msra.mxu0 0.0
        %1270 = vmatprep.subr.mxu0 0.0
        %1271 = vmatpush1.msra.mxu0 0.0
        %1272 = vmatprep.subr.mxu0 0.0
        %1273 = vmatpush1.msra.mxu0 0.0
        %1274 = vmatprep.subr.mxu0 0.0
        %1275 = vmatpush1.msra.mxu0 0.0
        %1276 = vmatprep.subr.mxu0 0.0
        %1277 = vmatpush1.msra.mxu0 0.0
        %1278 = vmatprep.subr.mxu0 0.0
        %1279 = vmatpush1.msra.mxu0 0.0
        %1280 = vmatprep.subr.mxu0 0.0
        %1281 = vmatpush1.msra.mxu0 0.0
        %1282 = vmatprep.subr.mxu0 0.0
        %1283 = vmatpush1.msra.mxu0 0.0
        %1284 = vmatprep.subr.mxu0 0.0
        %1285 = vmatpush1.msra.mxu0 0.0
        %1286 = vmatprep.subr.mxu0 0.0
        %1287 = vmatpush1.msra.mxu0 0.0
        %1288 = vmatprep.subr.mxu0 0.0
        %1289 = vmatpush1.msra.mxu0 0.0
        %1290 = vmatprep.subr.mxu0 0.0
        %1291 = vmatpush1.msra.mxu0 0.0
        %1292 = vmatprep.subr.mxu0 0.0
        %1293 = vmatpush1.msra.mxu0 0.0
        %1294 = vmatprep.mubr.f32.mxu0 0.0
        %1295 = vmatmul.mubr.f32.gmra.mrb[0].mxu0 %v1228
        %v1296 = vpop.f32.mrb[0].mxu0
        %v1297 = vadd.f32 %v1225, %v1296
        %v1298 = vpop.f32.mrb[0].mxu0
        %1299 = vdwg.mxu0
        %v1300 = vadd.f32 %v459, %v1297
        %1301 = vst.msk [vmem:[%s457] sm:$0xff] %vm488, %v1300
        %s1302 = sand.u32 %s260, 1
        %s1303 = scalar_lea.sflag [#allocation4], %s1302
        %s1304 = sand.u32 %s260, 1
        %s1305 = smul.addr %s1304, 8
        %s1306 = scalar_lea.vmem [#allocation12], %s1305
        // Predicated region
        $region81: #{tpu_custom_call.1} parent=59 // pred_check
          %p1307 = pneg %p270
        $region82: #{tpu_custom_call.1} parent=59 // pred_check_branch
          %1309 = sbr.rel (%p1307) target = $region84
        $region83: #{tpu_custom_call.1} parent=59 // pred_region
          %s1311 = ssub.s32 128, 128
          %1312 = vsyncadd %s1303, %s1311
          %s1313 = smul.addr %s32, 128
          %s1314 = scalar_lea.hbm %s10, %s1313
          %s1316 = sshll.u32 %s1306, 4
          %s1317 = int_to_ptr.vmem [resolvable:$true] %s1316
          %1319 = dma.vmem_to_hbm [thread:$0]  %s1317, 128, %s1314, %s1303
        $region84: #{tpu_custom_call.1} parent=59 // pred_fallthru
          _
      $region60: #{tpu_custom_call.1} parent=5 // pred_fallthru
        _
      %p1320 = scmp.le.s32.totalorder 2, %s27
      // Predicated region
      $region85: #{tpu_custom_call.1} parent=5 // pred_check
        %p1321 = pneg %p1320
      $region86: #{tpu_custom_call.1} parent=5 // pred_check_branch
        %1323 = sbr.rel (%p1321) target = $region88
      $region87: #{tpu_custom_call.1} parent=5 // pred_region
        %s1324 = ssub.s32 %s27, 2
        // Predicated region
        $region89: #{tpu_custom_call.1} parent=87 // pred_check
          %p1325 = pneg %p276
        $region90: #{tpu_custom_call.1} parent=87 // pred_check_branch
          %1327 = sbr.rel (%p1325) target = $region92
        $region91: #{tpu_custom_call.1} parent=87 // pred_region
          %s1328 = sand.u32 %s261, 1
          %s1329 = scalar_lea.sflag [#allocation4], %s1328
          %s1330 = sand.u32 %s261, 1
          %s1331 = smul.addr %s1330, 8
          %s1332 = scalar_lea.vmem [#allocation12], %s1331
          %1333 = dma.done %s1329, 128
        $region92: #{tpu_custom_call.1} parent=87 // pred_fallthru
          _
      $region88: #{tpu_custom_call.1} parent=5 // pred_fallthru
        _
    $region6: #{tpu_custom_call.1} parent=1 // loop_footer
      %s31 = sadd.s32 1, %s27
    $region7: #{tpu_custom_call.1} parent=1 // loop_footer_branch
      %26 = sbr.rel target = $region3
    $region8: #{tpu_custom_call.1} parent=1 // loop_exit
      _
    %1334 = vsyncpa [#allocation3], 1
    %s1335 = scalar_lea.sflag [#allocation3], 1
    %1336 = vsyncpa %s1335, 1
    %1337 = vsyncpa [#allocation7], 1
    %s1338 = scalar_lea.sflag [#allocation7], 1
    %1339 = vsyncpa %s1338, 1
    %1340 = vsyncpa [#allocation11], 1
    %1341 = vsyncpa [#allocation4], 1
    %s1342 = scalar_lea.sflag [#allocation4], 1
    %1343 = vsyncpa %s1342, 1
    %1344 = vsyncpa [#allocation5], 1
    %s1345 = scalar_lea.sflag [#allocation5], 1
    %1346 = vsyncpa %s1345, 1

</llo_original>
